<compile_context>
chip_gen: v6e
topology: v6e:2x2x1
jax: 0.10.0
libtpu: 0.0.40
codegen_flags: <defaults>
</compile_context>

<pallas_src>
import math

import jax
import jax.numpy as jnp
from jax import lax
from jax.experimental import pallas as pl
from jax.experimental.pallas import tpu as pltpu

H = 4          # n_heads hard-coded in Prior_Attention_Pooler (AttentionLayer(..., n_heads=4))
LN_EPS = 1e-5  # nn.LayerNorm default eps


def _pooler_kernel(prior_ref, x_ref, vec_ref, indt_ref, ind_ref,
                   wkv_ref, wo_ref, w1_ref, b1_ref, w2_ref,
                   out_ref, attn_ref):
    Bblk, S, D = x_ref.shape
    f32 = jnp.float32
    cdt = wkv_ref.dtype                                   # bf16 compute dtype for MXU operands

    # Packed per-feature vectors: [qw, qb, bk', bv', bo, b2, 0, 0]  -- (8, D), f32
    vecs = vec_ref[...]
    qw, qb = vecs[0:1, :], vecs[1:2, :]                   # folded Conv1d + Wq + 1/sqrt(dk)
    bk, bv = vecs[2:3, :], vecs[3:4, :]                   # LN-folded K/V biases
    bo, b2 = vecs[4:5, :], vecs[5:6, :]

    x = x_ref[...].astype(f32).reshape(Bblk * S, D)       # native (bf16) stream -> f32 in-core

    # --- LayerNorm #1 (gamma/beta folded into the K/V weights): only (x-mu)*rsqrt(var) ---
    mu = jnp.mean(x, axis=-1, keepdims=True)
    xc = x - mu
    var = jnp.mean(xc * xc, axis=-1, keepdims=True)
    xhat = xc * lax.rsqrt(var + LN_EPS)                   # (Bblk*S, D)

    # --- fused K/V projection: one (Bblk*S, D) x (D, 2D) bf16 MXU matmul, f32 accumulate ---
    kv = jnp.dot(xhat.astype(cdt), wkv_ref[...], preferred_element_type=f32)
    k3 = (kv[:, :D] + bk).reshape(Bblk, S, D)
    v3 = (kv[:, D:] + bv).reshape(Bblk, S, D)

    # --- folded query path: q[b] = prior[b]*qw + qb  (scale 1/sqrt(dk) already folded) ---
    q = prior_ref[...] * qw + qb                          # (Bblk, D)

    # --- scores[b,s,h] = sum_d q[b,d]*k[b,s,d]*ind[h,d]: ONE (Bblk*S, D)x(D, H) matmul ---
    qk = (q[:, None, :] * k3).reshape(Bblk * S, D)
    s = jnp.dot(qk, indt_ref[...],
                preferred_element_type=f32).reshape(Bblk, S, H)

    # --- softmax over S (f32, exact normalizer so exported attn rows sum to 1) ---
    m = jnp.max(s, axis=1, keepdims=True)
    e = jnp.exp(s - m)
    A = e * (1.0 / jnp.sum(e, axis=1, keepdims=True))     # (Bblk, S, H)
    attn_ref[...] = A.astype(attn_ref.dtype)              # host transposes to (B, H, 1, S)

    # --- context: expand head weights to feature space with ONE (Bblk*S, H)x(H, D) matmul,
    #     then fused multiply + sublane-reduce against V (no per-batch matmuls) ---
    Aexp = jnp.dot(A.reshape(Bblk * S, H), ind_ref[...],
                   preferred_element_type=f32).reshape(Bblk, S, D)
    ctx = jnp.sum(Aexp * v3, axis=1)                      # (Bblk, D)

    # --- AttentionLayer output projection ---
    o = jnp.dot(ctx.astype(cdt), wo_ref[...], preferred_element_type=f32) + bo

    # --- LayerNorm #2 (gamma/beta folded into dense1) ---
    mu2 = jnp.mean(o, axis=-1, keepdims=True)
    oc = o - mu2
    var2 = jnp.mean(oc * oc, axis=-1, keepdims=True)
    ohat = oc * lax.rsqrt(var2 + LN_EPS)                  # (Bblk, D)

    # --- FFN: Linear(D,4D) -> ReLU -> Linear(4D,Dout); dropouts identity in eval ---
    h1 = jnp.maximum(
        jnp.dot(ohat.astype(cdt), w1_ref[...], preferred_element_type=f32) + b1_ref[...], 0.0)
    y = jnp.dot(h1.astype(cdt), w2_ref[...], preferred_element_type=f32) + b2

    out_ref[...] = y.astype(out_ref.dtype)


def prior_attention_pooler(x, prior, params, block_b=None):
    """x: (B, S, D) any float dtype, prior: (B,). Returns (y (B,1,D_out), attn (B,H,1,S))."""
    B, S, D = x.shape
    Dh = params["w1_t"].shape[-1]
    Dout = params["w2_t"].shape[-1]
    dk = D // H
    scale = 1.0 / math.sqrt(dk)                            # FullAttention default scale
    f32, bf16 = jnp.float32, jnp.bfloat16

    g = params["ln_g"].astype(f32)                         # (1, D)
    be = params["ln_b"].astype(f32)                        # (1, D)

    # --- host-side constant folding (trace time, free) ---
    qw = (params["pp_w"] @ params["wq_t"]) * scale                        # Conv1d+Wq+scale
    qb = (params["pp_b"] @ params["wq_t"] + params["bq"]) * scale
    wk_f = g.T * params["wk_t"]; bk_f = be @ params["wk_t"] + params["bk"]   # LN -> K
    wv_f = g.T * params["wv_t"]; bv_f = be @ params["wv_t"] + params["bv"]   # LN -> V
    wkv = jnp.concatenate([wk_f, wv_f], axis=1).astype(bf16)             # (D, 2D) fused
    wo = params["wo_t"].astype(bf16)                                      # (D, D)
    w1_f = (g.T * params["w1_t"]).astype(bf16)                            # LN#2 -> dense1
    b1_f = (be @ params["w1_t"] + params["b1"]).astype(f32)               # (1, Dh)
    w2 = params["w2_t"].astype(bf16)                                      # (Dh, Dout)

    zpad = jnp.zeros((1, D), f32)
    vecs = jnp.concatenate([qw, qb, bk_f, bv_f, params["bo"], params["b2"], zpad, zpad],
                           axis=0).astype(f32)                            # (8, D)

    # head indicator, built once on the host (matmul operands in the kernel)
    ind_hd = (jnp.arange(D)[None, :] // dk == jnp.arange(H)[:, None]).astype(f32)  # (H, D)
    ind_dh = ind_hd.T                                                     # (D, H)

    # --- batch blocking ---
    if block_b is None:
        block_b = max(32, int(pl.cdiv(256, S)))            # fill MXU rows: Bblk>=32, Bblk*S>=256
        x_isz = jnp.dtype(x.dtype).itemsize
        per_row = S * D * (2 * x_isz + 6 * 4)              # VMEM bytes per batch row (x + f32 tmps)
        block_b = min(block_b, max(8, ((48 << 20) // max(per_row, 1)) // 8 * 8))
        # small-batch inference: keep >=2 grid steps so both v7x TensorCores get work
        half = ((int(pl.cdiv(B, 2)) + 7) // 8) * 8
        block_b = min(block_b, max(8, half))
    Bblk = block_b
    Bp = int(pl.cdiv(B, Bblk)) * Bblk
    if Bp != B:  # zero padding is numerically safe (no NaNs) and sliced off below
        x = jnp.pad(x, ((0, Bp - B), (0, 0), (0, 0)))
        prior = jnp.pad(prior, ((0, Bp - B),))
    prior2 = prior.reshape(Bp, 1).astype(f32)

    # --- VMEM limit computed from the actual blocks (v5e default scoped VMEM is only 16 MiB) ---
    x_isz = jnp.dtype(x.dtype).itemsize
    io_blk = Bblk * S * D * x_isz + Bblk * 4 + Bblk * Dout * 4 + Bblk * S * H * 4
    wt_blk = ((vecs.size + ind_dh.size + ind_hd.size + b1_f.size) * 4
              + (wkv.size + wo.size + w1_f.size + w2.size) * 2)
    scratch = Bblk * S * D * 4 * 6 + Bblk * (Dh + 4 * D) * 4
    vmem_limit = int(min(100 << 20, max(32 << 20, 2 * io_blk + 2 * wt_blk + scratch)))

    def _pooler_call(weight_pipeline_mode):
        def const_spec(shape):
            imap = lambda b: (0,) * len(shape)
            if weight_pipeline_mode is None:
                return pl.BlockSpec(shape, imap)
            return pl.BlockSpec(shape, imap, pipeline_mode=weight_pipeline_mode)

        in_specs = [
            pl.BlockSpec((Bblk, 1), lambda b: (b, 0)),          # prior
            pl.BlockSpec((Bblk, S, D), lambda b: (b, 0, 0)),    # x (native dtype stream)
            const_spec((8, D)),                                 # packed bias/affine vectors
            const_spec((D, H)),                                 # head indicator (D, H)
            const_spec((H, D)),                                 # head indicator (H, D)
            const_spec((D, 2 * D)),                             # [Wk|Wv] LN-folded, bf16
            const_spec((D, D)),                                 # Wo, bf16
            const_spec((D, Dh)),                                # dense1 LN-folded, bf16
            const_spec((1, Dh)),                                # dense1 bias, f32
            const_spec((Dh, Dout)),                             # dense2, bf16
        ]
        out_specs = [
            pl.BlockSpec((Bblk, Dout), lambda b: (b, 0)),
            pl.BlockSpec((Bblk, S, H), lambda b: (b, 0, 0)),
        ]
        out_shape = [
            jax.ShapeDtypeStruct((Bp, Dout), jnp.float32),
            jax.ShapeDtypeStruct((Bp, S, H), jnp.float32),
        ]
        return pl.pallas_call(
            _pooler_kernel,
            grid=(Bp // Bblk,),
            in_specs=in_specs,
            out_specs=out_specs,
            out_shape=out_shape,
            compiler_params=pltpu.CompilerParams(
                dimension_semantics=("parallel",),   # shard batch blocks across v7x TensorCores
                vmem_limit_bytes=vmem_limit),
        )

    args = (prior2, x, vecs, ind_dh, ind_hd, wkv, wo, w1_f, b1_f, w2)
    try:
        # Constant-index weights only need one VMEM buffer; halves weight residency (key on
        # v7x's 64 MiB VMEM, harmless elsewhere).
        y, attn = _pooler_call(pl.Buffered(1))(*args)
    except Exception:  # jax without BlockSpec.pipeline_mode -> default double buffering
        y, attn = _pooler_call(None)(*args)

    y = y[:B].reshape(B, 1, Dout)
    # Kernel stores A as (B, S, H) (natural layout of the restructured matmuls); the tiny
    # host transpose yields the PyTorch (B, H, 1, S) view.
    attn4 = jnp.transpose(attn[:B], (0, 2, 1))[:, :, None, :]
    return y, attn4


def init_params(key, D, Dout):
    """Deterministic synthetic parameters; Linear weights stored pre-transposed (in, out)."""
    assert Dout == D, "PyTorch module only runs when output_dim == input_dim (d_model)"
    Dh = 4 * D
    ks = jax.random.split(key, 16)

    def u(k, shape, fan_in):
        b = 1.0 / math.sqrt(fan_in)
        return jax.random.uniform(k, shape, jnp.float32, -b, b)

    return {
        # Conv1d(1, Dout, kernel_size=1): weight (Dout,1,1), bias (Dout,) -> stored (1, Dout)
        "pp_w": u(ks[0], (1, Dout), 1), "pp_b": u(ks[1], (1, Dout), 1),
        # LayerNorm(D)
        "ln_g": jnp.ones((1, D), jnp.float32), "ln_b": jnp.zeros((1, D), jnp.float32),
        # AttentionLayer projections (d_model -> d_model)
        "wq_t": u(ks[2], (D, D), D), "bq": u(ks[3], (1, D), D),
        "wk_t": u(ks[4], (D, D), D), "bk": u(ks[5], (1, D), D),
        "wv_t": u(ks[6], (D, D), D), "bv": u(ks[7], (1, D), D),
        "wo_t": u(ks[8], (D, D), D), "bo": u(ks[9], (1, D), D),
        # FFN: Linear(D, 4D), Linear(4D, Dout)
        "w1_t": u(ks[10], (D, Dh), D), "b1": u(ks[11], (1, Dh), D),
        "w2_t": u(ks[12], (Dh, Dout), Dh), "b2": u(ks[13], (1, Dout), Dh),
    }


def reference(x, prior, params):
    """Pure-JAX reference matching the PyTorch forward (eval mode), unfused/unfolded."""
    B, S, D = x.shape
    dk = D // H

    def ln(z):
        mu = jnp.mean(z, -1, keepdims=True)
        zc = z - mu
        var = jnp.mean(zc * zc, -1, keepdims=True)
        return zc / jnp.sqrt(var + LN_EPS) * params["ln_g"][0] + params["ln_b"][0]

    x_ln = ln(x)
    q_in = prior.reshape(B, 1, 1) * params["pp_w"][0] + params["pp_b"][0]        # (B,1,D)
    q = (q_in @ params["wq_t"] + params["bq"][0]).reshape(B, 1, H, dk)
    k = (x_ln @ params["wk_t"] + params["bk"][0]).reshape(B, S, H, dk)
    v = (x_ln @ params["wv_t"] + params["bv"][0]).reshape(B, S, H, dk)
    scores = jnp.einsum("blhe,bshe->bhls", q, k) / math.sqrt(dk)
    A = jax.nn.softmax(scores, axis=-1)                                          # (B,H,1,S)
    ctx = jnp.einsum("bhls,bshd->blhd", A, v).reshape(B, 1, D)
    o = ctx @ params["wo_t"] + params["bo"][0]
    o_ln = ln(o)
    h1 = jax.nn.relu(o_ln @ params["w1_t"] + params["b1"][0])
    y = h1 @ params["w2_t"] + params["b2"][0]
    return y, A


if __name__ == "__main__":
    B, S, D = 2, 8, 32      # batch, sequence length, input_dim (= output_dim)
    Dout = 32

    key = jax.random.PRNGKey(0)
    kx, kp, kw = jax.random.split(key, 3)
    # x streamed in bf16 (halves the dominant HBM stream); the reference uses the same values.
    x = jax.random.normal(kx, (B, S, D), jnp.float32).astype(jnp.bfloat16)
    prior = jax.random.normal(kp, (B,), jnp.float32)
    params = init_params(kw, D, Dout)

    y, attn = prior_attention_pooler(x, prior, params)
    y = jax.block_until_ready(y)
    attn = jax.block_until_ready(attn)

    y_ref, attn_ref = reference(x.astype(jnp.float32), prior, params)
    assert y.shape == (B, 1, Dout) and attn.shape == (B, H, 1, S)
    # Tolerances account for bf16 MXU operands (f32 accumulation); softmax is exact, so the
    # attention map stays tight and rows sum to 1.
    assert jnp.allclose(y, y_ref, rtol=2e-2, atol=2e-2), "output mismatch vs reference"
    assert jnp.allclose(attn, attn_ref, rtol=2e-2, atol=3e-3), "attention mismatch vs reference"

    print("KERNEL_OK")
</pallas_src>

<mosaic_0001>
module attributes {stable_mosaic.version = 11 : i64} {
  func.func @_pooler_kernel(%arg0: i32, %arg1: memref<8x1xf32, #tpu.memory_space<vmem>>, %arg2: memref<8x8x32xbf16, #tpu.memory_space<vmem>>, %arg3: memref<8x32xf32, #tpu.memory_space<vmem>>, %arg4: memref<32x4xf32, #tpu.memory_space<vmem>>, %arg5: memref<4x32xf32, #tpu.memory_space<vmem>>, %arg6: memref<32x64xbf16, #tpu.memory_space<vmem>>, %arg7: memref<32x32xbf16, #tpu.memory_space<vmem>>, %arg8: memref<32x128xbf16, #tpu.memory_space<vmem>>, %arg9: memref<1x128xf32, #tpu.memory_space<vmem>>, %arg10: memref<128x32xbf16, #tpu.memory_space<vmem>>, %arg11: memref<8x32xf32, #tpu.memory_space<vmem>>, %arg12: memref<8x8x4xf32, #tpu.memory_space<vmem>>) attributes {dimension_semantics = [#tpu.dimension_semantics<parallel>], iteration_bounds = array<i64: 1>, scalar_prefetch = 0 : i64, scratch_operands = 0 : i64, tpu.core_type = #tpu.core_type<tc>, window_params = [{transform_indices = @transform_0, window_bounds = array<i64: 8, 1>}, {transform_indices = @transform_1, window_bounds = array<i64: 8, 8, 32>}, {pipeline_mode = #tpu.pipeline_mode<synchronous>, transform_indices = @transform_2, window_bounds = array<i64: 8, 32>}, {pipeline_mode = #tpu.pipeline_mode<synchronous>, transform_indices = @transform_3, window_bounds = array<i64: 32, 4>}, {pipeline_mode = #tpu.pipeline_mode<synchronous>, transform_indices = @transform_4, window_bounds = array<i64: 4, 32>}, {pipeline_mode = #tpu.pipeline_mode<synchronous>, transform_indices = @transform_5, window_bounds = array<i64: 32, 64>}, {pipeline_mode = #tpu.pipeline_mode<synchronous>, transform_indices = @transform_6, window_bounds = array<i64: 32, 32>}, {pipeline_mode = #tpu.pipeline_mode<synchronous>, transform_indices = @transform_7, window_bounds = array<i64: 32, 128>}, {pipeline_mode = #tpu.pipeline_mode<synchronous>, transform_indices = @transform_8, window_bounds = array<i64: 1, 128>}, {pipeline_mode = #tpu.pipeline_mode<synchronous>, transform_indices = @transform_9, window_bounds = array<i64: 128, 32>}, {transform_indices = @transform_10, window_bounds = array<i64: 8, 32>}, {transform_indices = @transform_11, window_bounds = array<i64: 8, 8, 4>}]} {
    %c0 = arith.constant 0 : index
    %c0_0 = arith.constant 0 : index
    %0 = vector.load %arg3[%c0, %c0_0] : memref<8x32xf32, #tpu.memory_space<vmem>>, vector<8x32xf32>
    %1 = vector.extract_strided_slice %0 {offsets = [0, 0], sizes = [1, 32], strides = [1, 1]} : vector<8x32xf32> to vector<1x32xf32>
    %2 = vector.extract_strided_slice %0 {offsets = [1, 0], sizes = [1, 32], strides = [1, 1]} : vector<8x32xf32> to vector<1x32xf32>
    %3 = vector.extract_strided_slice %0 {offsets = [2, 0], sizes = [1, 32], strides = [1, 1]} : vector<8x32xf32> to vector<1x32xf32>
    %4 = vector.extract_strided_slice %0 {offsets = [3, 0], sizes = [1, 32], strides = [1, 1]} : vector<8x32xf32> to vector<1x32xf32>
    %5 = vector.extract_strided_slice %0 {offsets = [4, 0], sizes = [1, 32], strides = [1, 1]} : vector<8x32xf32> to vector<1x32xf32>
    %6 = vector.extract_strided_slice %0 {offsets = [5, 0], sizes = [1, 32], strides = [1, 1]} : vector<8x32xf32> to vector<1x32xf32>
    %c0_1 = arith.constant 0 : index
    %c0_2 = arith.constant 0 : index
    %c0_3 = arith.constant 0 : index
    %7 = vector.load %arg2[%c0_1, %c0_2, %c0_3] : memref<8x8x32xbf16, #tpu.memory_space<vmem>>, vector<8x8x32xbf16>
    %8 = arith.extf %7 : vector<8x8x32xbf16> to vector<8x8x32xf32>
    %9 = vector.shape_cast %8 : vector<8x8x32xf32> to vector<64x32xf32>
    %cst = arith.constant dense<0.000000e+00> : vector<64xf32>
    %10 = vector.multi_reduction <add>, %9, %cst [1] : vector<64x32xf32> to vector<64xf32>
    %11 = vector.shape_cast %10 : vector<64xf32> to vector<64x1xf32>
    %cst_4 = arith.constant 3.200000e+01 : f32
    %12 = vector.broadcast %cst_4 : f32 to vector<64x1xf32>
    %13 = arith.divf %11, %12 : vector<64x1xf32>
    %14 = vector.broadcast %13 : vector<64x1xf32> to vector<64x32xf32>
    %15 = arith.subf %9, %14 : vector<64x32xf32>
    %16 = arith.mulf %15, %15 : vector<64x32xf32>
    %cst_5 = arith.constant dense<0.000000e+00> : vector<64xf32>
    %17 = vector.multi_reduction <add>, %16, %cst_5 [1] : vector<64x32xf32> to vector<64xf32>
    %18 = vector.shape_cast %17 : vector<64xf32> to vector<64x1xf32>
    %cst_6 = arith.constant 3.200000e+01 : f32
    %19 = vector.broadcast %cst_6 : f32 to vector<64x1xf32>
    %20 = arith.divf %18, %19 : vector<64x1xf32>
    %cst_7 = arith.constant 9.99999974E-6 : f32
    %21 = vector.broadcast %cst_7 : f32 to vector<64x1xf32>
    %22 = arith.addf %20, %21 : vector<64x1xf32>
    %23 = math.rsqrt %22 : vector<64x1xf32>
    %24 = vector.broadcast %23 : vector<64x1xf32> to vector<64x32xf32>
    %25 = arith.mulf %15, %24 : vector<64x32xf32>
    %26 = arith.truncf %25 : vector<64x32xf32> to vector<64x32xbf16>
    %c0_8 = arith.constant 0 : index
    %c0_9 = arith.constant 0 : index
    %27 = vector.load %arg6[%c0_8, %c0_9] : memref<32x64xbf16, #tpu.memory_space<vmem>>, vector<32x64xbf16>
    %cst_10 = arith.constant dense<0.000000e+00> : vector<64x64xf32>
    %28 = tpu.matmul %26, %27, %cst_10 {dimension_numbers = #tpu.dot_dimension_numbers<[1], [0], [0], [1], [0, 0, 1, 1], [], []>} : vector<64x32xbf16>, vector<32x64xbf16>, vector<64x64xf32> -> vector<64x64xf32>
    %29 = vector.extract_strided_slice %28 {offsets = [0, 0], sizes = [64, 32], strides = [1, 1]} : vector<64x64xf32> to vector<64x32xf32>
    %30 = vector.broadcast %3 : vector<1x32xf32> to vector<64x32xf32>
    %31 = arith.addf %29, %30 : vector<64x32xf32>
    %32 = vector.shape_cast %31 : vector<64x32xf32> to vector<8x8x32xf32>
    %33 = vector.extract_strided_slice %28 {offsets = [0, 32], sizes = [64, 32], strides = [1, 1]} : vector<64x64xf32> to vector<64x32xf32>
    %34 = vector.broadcast %4 : vector<1x32xf32> to vector<64x32xf32>
    %35 = arith.addf %33, %34 : vector<64x32xf32>
    %36 = vector.shape_cast %35 : vector<64x32xf32> to vector<8x8x32xf32>
    %c0_11 = arith.constant 0 : index
    %c0_12 = arith.constant 0 : index
    %37 = vector.load %arg1[%c0_11, %c0_12] : memref<8x1xf32, #tpu.memory_space<vmem>>, vector<8x1xf32>
    %38 = vector.broadcast %37 : vector<8x1xf32> to vector<8x32xf32>
    %39 = vector.broadcast %1 : vector<1x32xf32> to vector<8x32xf32>
    %40 = arith.mulf %38, %39 : vector<8x32xf32>
    %41 = vector.broadcast %2 : vector<1x32xf32> to vector<8x32xf32>
    %42 = arith.addf %40, %41 : vector<8x32xf32>
    %43 = vector.shape_cast %42 : vector<8x32xf32> to vector<8x1x32xf32>
    %44 = vector.broadcast %43 : vector<8x1x32xf32> to vector<8x8x32xf32>
    %45 = arith.mulf %44, %32 : vector<8x8x32xf32>
    %46 = vector.shape_cast %45 : vector<8x8x32xf32> to vector<64x32xf32>
    %c0_13 = arith.constant 0 : index
    %c0_14 = arith.constant 0 : index
    %47 = vector.load %arg4[%c0_13, %c0_14] : memref<32x4xf32, #tpu.memory_space<vmem>>, vector<32x4xf32>
    %cst_15 = arith.constant dense<0.000000e+00> : vector<64x4xf32>
    %48 = tpu.matmul %46, %47, %cst_15 {dimension_numbers = #tpu.dot_dimension_numbers<[1], [0], [0], [1], [0, 0, 1, 1], [], []>} : vector<64x32xf32>, vector<32x4xf32>, vector<64x4xf32> -> vector<64x4xf32>
    %49 = vector.shape_cast %48 : vector<64x4xf32> to vector<8x8x4xf32>
    %cst_16 = arith.constant dense<0xFF800000> : vector<8x4xf32>
    %50 = vector.multi_reduction <maximumf>, %49, %cst_16 [1] : vector<8x8x4xf32> to vector<8x4xf32>
    %51 = vector.shape_cast %50 : vector<8x4xf32> to vector<8x1x4xf32>
    %52 = vector.broadcast %51 : vector<8x1x4xf32> to vector<8x8x4xf32>
    %53 = arith.subf %49, %52 : vector<8x8x4xf32>
    %54 = math.exp %53 : vector<8x8x4xf32>
    %cst_17 = arith.constant dense<0.000000e+00> : vector<8x4xf32>
    %55 = vector.multi_reduction <add>, %54, %cst_17 [1] : vector<8x8x4xf32> to vector<8x4xf32>
    %56 = vector.shape_cast %55 : vector<8x4xf32> to vector<8x1x4xf32>
    %cst_18 = arith.constant 1.000000e+00 : f32
    %57 = vector.broadcast %cst_18 : f32 to vector<8x1x4xf32>
    %58 = arith.divf %57, %56 : vector<8x1x4xf32>
    %59 = vector.broadcast %58 : vector<8x1x4xf32> to vector<8x8x4xf32>
    %60 = arith.mulf %54, %59 : vector<8x8x4xf32>
    %c0_19 = arith.constant 0 : index
    %c0_20 = arith.constant 0 : index
    %c0_21 = arith.constant 0 : index
    %61 = vector.load %arg12[%c0_19, %c0_20, %c0_21] : memref<8x8x4xf32, #tpu.memory_space<vmem>>, vector<8x8x4xf32>
    tpu.vector_store %arg12[%c0_19, %c0_20, %c0_21], %60 {strides = array<i32>} : memref<8x8x4xf32, #tpu.memory_space<vmem>>, vector<8x8x4xf32>,
    %62 = vector.shape_cast %60 : vector<8x8x4xf32> to vector<64x4xf32>
    %c0_22 = arith.constant 0 : index
    %c0_23 = arith.constant 0 : index
    %63 = vector.load %arg5[%c0_22, %c0_23] : memref<4x32xf32, #tpu.memory_space<vmem>>, vector<4x32xf32>
    %cst_24 = arith.constant dense<0.000000e+00> : vector<64x32xf32>
    %64 = tpu.matmul %62, %63, %cst_24 {dimension_numbers = #tpu.dot_dimension_numbers<[1], [0], [0], [1], [0, 0, 1, 1], [], []>} : vector<64x4xf32>, vector<4x32xf32>, vector<64x32xf32> -> vector<64x32xf32>
    %65 = vector.shape_cast %64 : vector<64x32xf32> to vector<8x8x32xf32>
    %66 = arith.mulf %65, %36 : vector<8x8x32xf32>
    %cst_25 = arith.constant dense<0.000000e+00> : vector<8x32xf32>
    %67 = vector.multi_reduction <add>, %66, %cst_25 [1] : vector<8x8x32xf32> to vector<8x32xf32>
    %68 = arith.truncf %67 : vector<8x32xf32> to vector<8x32xbf16>
    %c0_26 = arith.constant 0 : index
    %c0_27 = arith.constant 0 : index
    %69 = vector.load %arg7[%c0_26, %c0_27] : memref<32x32xbf16, #tpu.memory_space<vmem>>, vector<32x32xbf16>
    %cst_28 = arith.constant dense<0.000000e+00> : vector<8x32xf32>
    %70 = tpu.matmul %68, %69, %cst_28 {dimension_numbers = #tpu.dot_dimension_numbers<[1], [0], [0], [1], [0, 0, 1, 1], [], []>} : vector<8x32xbf16>, vector<32x32xbf16>, vector<8x32xf32> -> vector<8x32xf32>
    %71 = vector.broadcast %5 : vector<1x32xf32> to vector<8x32xf32>
    %72 = arith.addf %70, %71 : vector<8x32xf32>
    %cst_29 = arith.constant dense<0.000000e+00> : vector<8xf32>
    %73 = vector.multi_reduction <add>, %72, %cst_29 [1] : vector<8x32xf32> to vector<8xf32>
    %74 = vector.shape_cast %73 : vector<8xf32> to vector<8x1xf32>
    %cst_30 = arith.constant 3.200000e+01 : f32
    %75 = vector.broadcast %cst_30 : f32 to vector<8x1xf32>
    %76 = arith.divf %74, %75 : vector<8x1xf32>
    %77 = vector.broadcast %76 : vector<8x1xf32> to vector<8x32xf32>
    %78 = arith.subf %72, %77 : vector<8x32xf32>
    %79 = arith.mulf %78, %78 : vector<8x32xf32>
    %cst_31 = arith.constant dense<0.000000e+00> : vector<8xf32>
    %80 = vector.multi_reduction <add>, %79, %cst_31 [1] : vector<8x32xf32> to vector<8xf32>
    %81 = vector.shape_cast %80 : vector<8xf32> to vector<8x1xf32>
    %cst_32 = arith.constant 3.200000e+01 : f32
    %82 = vector.broadcast %cst_32 : f32 to vector<8x1xf32>
    %83 = arith.divf %81, %82 : vector<8x1xf32>
    %cst_33 = arith.constant 9.99999974E-6 : f32
    %84 = vector.broadcast %cst_33 : f32 to vector<8x1xf32>
    %85 = arith.addf %83, %84 : vector<8x1xf32>
    %86 = math.rsqrt %85 : vector<8x1xf32>
    %87 = vector.broadcast %86 : vector<8x1xf32> to vector<8x32xf32>
    %88 = arith.mulf %78, %87 : vector<8x32xf32>
    %89 = arith.truncf %88 : vector<8x32xf32> to vector<8x32xbf16>
    %c0_34 = arith.constant 0 : index
    %c0_35 = arith.constant 0 : index
    %90 = vector.load %arg8[%c0_34, %c0_35] : memref<32x128xbf16, #tpu.memory_space<vmem>>, vector<32x128xbf16>
    %cst_36 = arith.constant dense<0.000000e+00> : vector<8x128xf32>
    %91 = tpu.matmul %89, %90, %cst_36 {dimension_numbers = #tpu.dot_dimension_numbers<[1], [0], [0], [1], [0, 0, 1, 1], [], []>} : vector<8x32xbf16>, vector<32x128xbf16>, vector<8x128xf32> -> vector<8x128xf32>
    %c0_37 = arith.constant 0 : index
    %c0_38 = arith.constant 0 : index
    %92 = vector.load %arg9[%c0_37, %c0_38] : memref<1x128xf32, #tpu.memory_space<vmem>>, vector<1x128xf32>
    %93 = vector.broadcast %92 : vector<1x128xf32> to vector<8x128xf32>
    %94 = arith.addf %91, %93 : vector<8x128xf32>
    %cst_39 = arith.constant 0.000000e+00 : f32
    %95 = vector.broadcast %cst_39 : f32 to vector<8x128xf32>
    %96 = arith.maximumf %94, %95 : vector<8x128xf32>
    %97 = arith.truncf %96 : vector<8x128xf32> to vector<8x128xbf16>
    %c0_40 = arith.constant 0 : index
    %c0_41 = arith.constant 0 : index
    %98 = vector.load %arg10[%c0_40, %c0_41] : memref<128x32xbf16, #tpu.memory_space<vmem>>, vector<128x32xbf16>
    %cst_42 = arith.constant dense<0.000000e+00> : vector<8x32xf32>
    %99 = tpu.matmul %97, %98, %cst_42 {dimension_numbers = #tpu.dot_dimension_numbers<[1], [0], [0], [1], [0, 0, 1, 1], [], []>} : vector<8x128xbf16>, vector<128x32xbf16>, vector<8x32xf32> -> vector<8x32xf32>
    %100 = vector.broadcast %6 : vector<1x32xf32> to vector<8x32xf32>
    %101 = arith.addf %99, %100 : vector<8x32xf32>
    %c0_43 = arith.constant 0 : index
    %c0_44 = arith.constant 0 : index
    %102 = vector.load %arg11[%c0_43, %c0_44] : memref<8x32xf32, #tpu.memory_space<vmem>>, vector<8x32xf32>
    tpu.vector_store %arg11[%c0_43, %c0_44], %101 {strides = array<i32>} : memref<8x32xf32, #tpu.memory_space<vmem>>, vector<8x32xf32>,
    return
  }
  func.func @transform_0(%arg0: i32) -> (i32, i32) {
    %c0_i32 = arith.constant 0 : i32
    %c0_i32_0 = arith.constant 0 : i32
    return %arg0, %c0_i32 : i32, i32
  }
  func.func @transform_1(%arg0: i32) -> (i32, i32, i32) {
    %c0_i32 = arith.constant 0 : i32
    %c0_i32_0 = arith.constant 0 : i32
    %c0_i32_1 = arith.constant 0 : i32
    return %arg0, %c0_i32, %c0_i32_0 : i32, i32, i32
  }
  func.func @transform_2(%arg0: i32) -> (i32, i32) {
    %c0_i32 = arith.constant 0 : i32
    %c0_i32_0 = arith.constant 0 : i32
    %c0_i32_1 = arith.constant 0 : i32
    return %c0_i32, %c0_i32_0 : i32, i32
  }
  func.func @transform_3(%arg0: i32) -> (i32, i32) {
    %c0_i32 = arith.constant 0 : i32
    %c0_i32_0 = arith.constant 0 : i32
    %c0_i32_1 = arith.constant 0 : i32
    return %c0_i32, %c0_i32_0 : i32, i32
  }
  func.func @transform_4(%arg0: i32) -> (i32, i32) {
    %c0_i32 = arith.constant 0 : i32
    %c0_i32_0 = arith.constant 0 : i32
    %c0_i32_1 = arith.constant 0 : i32
    return %c0_i32, %c0_i32_0 : i32, i32
  }
  func.func @transform_5(%arg0: i32) -> (i32, i32) {
    %c0_i32 = arith.constant 0 : i32
    %c0_i32_0 = arith.constant 0 : i32
    %c0_i32_1 = arith.constant 0 : i32
    return %c0_i32, %c0_i32_0 : i32, i32
  }
  func.func @transform_6(%arg0: i32) -> (i32, i32) {
    %c0_i32 = arith.constant 0 : i32
    %c0_i32_0 = arith.constant 0 : i32
    %c0_i32_1 = arith.constant 0 : i32
    return %c0_i32, %c0_i32_0 : i32, i32
  }
  func.func @transform_7(%arg0: i32) -> (i32, i32) {
    %c0_i32 = arith.constant 0 : i32
    %c0_i32_0 = arith.constant 0 : i32
    %c0_i32_1 = arith.constant 0 : i32
    return %c0_i32, %c0_i32_0 : i32, i32
  }
  func.func @transform_8(%arg0: i32) -> (i32, i32) {
    %c0_i32 = arith.constant 0 : i32
    %c0_i32_0 = arith.constant 0 : i32
    %c0_i32_1 = arith.constant 0 : i32
    return %c0_i32, %c0_i32_0 : i32, i32
  }
  func.func @transform_9(%arg0: i32) -> (i32, i32) {
    %c0_i32 = arith.constant 0 : i32
    %c0_i32_0 = arith.constant 0 : i32
    %c0_i32_1 = arith.constant 0 : i32
    return %c0_i32, %c0_i32_0 : i32, i32
  }
  func.func @transform_10(%arg0: i32) -> (i32, i32) {
    %c0_i32 = arith.constant 0 : i32
    %c0_i32_0 = arith.constant 0 : i32
    return %arg0, %c0_i32 : i32, i32
  }
  func.func @transform_11(%arg0: i32) -> (i32, i32, i32) {
    %c0_i32 = arith.constant 0 : i32
    %c0_i32_0 = arith.constant 0 : i32
    %c0_i32_1 = arith.constant 0 : i32
    return %arg0, %c0_i32, %c0_i32_0 : i32, i32, i32
  }
}

module attributes {stable_mosaic.version = 11 : i64} {
  func.func @_pooler_kernel(%arg0: i32, %arg1: memref<8x1xf32, #tpu.memory_space<vmem>>, %arg2: memref<8x8x32xbf16, #tpu.memory_space<vmem>>, %arg3: memref<8x32xf32, #tpu.memory_space<vmem>>, %arg4: memref<32x4xf32, #tpu.memory_space<vmem>>, %arg5: memref<4x32xf32, #tpu.memory_space<vmem>>, %arg6: memref<32x64xbf16, #tpu.memory_space<vmem>>, %arg7: memref<32x32xbf16, #tpu.memory_space<vmem>>, %arg8: memref<32x128xbf16, #tpu.memory_space<vmem>>, %arg9: memref<1x128xf32, #tpu.memory_space<vmem>>, %arg10: memref<128x32xbf16, #tpu.memory_space<vmem>>, %arg11: memref<8x32xf32, #tpu.memory_space<vmem>>, %arg12: memref<8x8x4xf32, #tpu.memory_space<vmem>>) attributes {dimension_semantics = [#tpu.dimension_semantics<parallel>], iteration_bounds = array<i64: 1>, scalar_prefetch = 0 : i64, scratch_operands = 0 : i64, tpu.core_type = #tpu.core_type<tc>, window_params = [{transform_indices = @transform_0, window_bounds = array<i64: 8, 1>}, {transform_indices = @transform_1, window_bounds = array<i64: 8, 8, 32>}, {pipeline_mode = #tpu.pipeline_mode<synchronous>, transform_indices = @transform_2, window_bounds = array<i64: 8, 32>}, {pipeline_mode = #tpu.pipeline_mode<synchronous>, transform_indices = @transform_3, window_bounds = array<i64: 32, 4>}, {pipeline_mode = #tpu.pipeline_mode<synchronous>, transform_indices = @transform_4, window_bounds = array<i64: 4, 32>}, {pipeline_mode = #tpu.pipeline_mode<synchronous>, transform_indices = @transform_5, window_bounds = array<i64: 32, 64>}, {pipeline_mode = #tpu.pipeline_mode<synchronous>, transform_indices = @transform_6, window_bounds = array<i64: 32, 32>}, {pipeline_mode = #tpu.pipeline_mode<synchronous>, transform_indices = @transform_7, window_bounds = array<i64: 32, 128>}, {pipeline_mode = #tpu.pipeline_mode<synchronous>, transform_indices = @transform_8, window_bounds = array<i64: 1, 128>}, {pipeline_mode = #tpu.pipeline_mode<synchronous>, transform_indices = @transform_9, window_bounds = array<i64: 128, 32>}, {transform_indices = @transform_10, window_bounds = array<i64: 8, 32>}, {transform_indices = @transform_11, window_bounds = array<i64: 8, 8, 4>}]} {
    %c0 = arith.constant 0 : index
    %c0_0 = arith.constant 0 : index
    %0 = vector.load %arg3[%c0, %c0_0] : memref<8x32xf32, #tpu.memory_space<vmem>>, vector<8x32xf32>
    %1 = vector.extract_strided_slice %0 {offsets = [0, 0], sizes = [1, 32], strides = [1, 1]} : vector<8x32xf32> to vector<1x32xf32>
    %2 = vector.extract_strided_slice %0 {offsets = [1, 0], sizes = [1, 32], strides = [1, 1]} : vector<8x32xf32> to vector<1x32xf32>
    %3 = vector.extract_strided_slice %0 {offsets = [2, 0], sizes = [1, 32], strides = [1, 1]} : vector<8x32xf32> to vector<1x32xf32>
    %4 = vector.extract_strided_slice %0 {offsets = [3, 0], sizes = [1, 32], strides = [1, 1]} : vector<8x32xf32> to vector<1x32xf32>
    %5 = vector.extract_strided_slice %0 {offsets = [4, 0], sizes = [1, 32], strides = [1, 1]} : vector<8x32xf32> to vector<1x32xf32>
    %6 = vector.extract_strided_slice %0 {offsets = [5, 0], sizes = [1, 32], strides = [1, 1]} : vector<8x32xf32> to vector<1x32xf32>
    %c0_1 = arith.constant 0 : index
    %c0_2 = arith.constant 0 : index
    %c0_3 = arith.constant 0 : index
    %7 = vector.load %arg2[%c0_1, %c0_2, %c0_3] : memref<8x8x32xbf16, #tpu.memory_space<vmem>>, vector<8x8x32xbf16>
    %8 = arith.extf %7 : vector<8x8x32xbf16> to vector<8x8x32xf32>
    %9 = vector.shape_cast %8 : vector<8x8x32xf32> to vector<64x32xf32>
    %cst = arith.constant dense<0.000000e+00> : vector<64xf32>
    %10 = vector.multi_reduction <add>, %9, %cst [1] : vector<64x32xf32> to vector<64xf32>
    %11 = vector.shape_cast %10 : vector<64xf32> to vector<64x1xf32>
    %cst_4 = arith.constant 3.200000e+01 : f32
    %12 = vector.broadcast %cst_4 : f32 to vector<64x1xf32>
    %13 = arith.divf %11, %12 : vector<64x1xf32>
    %14 = vector.broadcast %13 : vector<64x1xf32> to vector<64x32xf32>
    %15 = arith.subf %9, %14 : vector<64x32xf32>
    %16 = arith.mulf %15, %15 : vector<64x32xf32>
    %cst_5 = arith.constant dense<0.000000e+00> : vector<64xf32>
    %17 = vector.multi_reduction <add>, %16, %cst_5 [1] : vector<64x32xf32> to vector<64xf32>
    %18 = vector.shape_cast %17 : vector<64xf32> to vector<64x1xf32>
    %cst_6 = arith.constant 3.200000e+01 : f32
    %19 = vector.broadcast %cst_6 : f32 to vector<64x1xf32>
    %20 = arith.divf %18, %19 : vector<64x1xf32>
    %cst_7 = arith.constant 9.99999974E-6 : f32
    %21 = vector.broadcast %cst_7 : f32 to vector<64x1xf32>
    %22 = arith.addf %20, %21 : vector<64x1xf32>
    %23 = math.rsqrt %22 : vector<64x1xf32>
    %24 = vector.broadcast %23 : vector<64x1xf32> to vector<64x32xf32>
    %25 = arith.mulf %15, %24 : vector<64x32xf32>
    %26 = arith.truncf %25 : vector<64x32xf32> to vector<64x32xbf16>
    %c0_8 = arith.constant 0 : index
    %c0_9 = arith.constant 0 : index
    %27 = vector.load %arg6[%c0_8, %c0_9] : memref<32x64xbf16, #tpu.memory_space<vmem>>, vector<32x64xbf16>
    %cst_10 = arith.constant dense<0.000000e+00> : vector<64x64xf32>
    %28 = tpu.matmul %26, %27, %cst_10 {dimension_numbers = #tpu.dot_dimension_numbers<[1], [0], [0], [1], [0, 0, 1, 1], [], []>} : vector<64x32xbf16>, vector<32x64xbf16>, vector<64x64xf32> -> vector<64x64xf32>
    %29 = vector.extract_strided_slice %28 {offsets = [0, 0], sizes = [64, 32], strides = [1, 1]} : vector<64x64xf32> to vector<64x32xf32>
    %30 = vector.broadcast %3 : vector<1x32xf32> to vector<64x32xf32>
    %31 = arith.addf %29, %30 : vector<64x32xf32>
    %32 = vector.shape_cast %31 : vector<64x32xf32> to vector<8x8x32xf32>
    %33 = vector.extract_strided_slice %28 {offsets = [0, 32], sizes = [64, 32], strides = [1, 1]} : vector<64x64xf32> to vector<64x32xf32>
    %34 = vector.broadcast %4 : vector<1x32xf32> to vector<64x32xf32>
    %35 = arith.addf %33, %34 : vector<64x32xf32>
    %36 = vector.shape_cast %35 : vector<64x32xf32> to vector<8x8x32xf32>
    %c0_11 = arith.constant 0 : index
    %c0_12 = arith.constant 0 : index
    %37 = vector.load %arg1[%c0_11, %c0_12] : memref<8x1xf32, #tpu.memory_space<vmem>>, vector<8x1xf32>
    %38 = vector.broadcast %37 : vector<8x1xf32> to vector<8x32xf32>
    %39 = vector.broadcast %1 : vector<1x32xf32> to vector<8x32xf32>
    %40 = arith.mulf %38, %39 : vector<8x32xf32>
    %41 = vector.broadcast %2 : vector<1x32xf32> to vector<8x32xf32>
    %42 = arith.addf %40, %41 : vector<8x32xf32>
    %43 = vector.shape_cast %42 : vector<8x32xf32> to vector<8x1x32xf32>
    %44 = vector.broadcast %43 : vector<8x1x32xf32> to vector<8x8x32xf32>
    %45 = arith.mulf %44, %32 : vector<8x8x32xf32>
    %46 = vector.shape_cast %45 : vector<8x8x32xf32> to vector<64x32xf32>
    %c0_13 = arith.constant 0 : index
    %c0_14 = arith.constant 0 : index
    %47 = vector.load %arg4[%c0_13, %c0_14] : memref<32x4xf32, #tpu.memory_space<vmem>>, vector<32x4xf32>
    %cst_15 = arith.constant dense<0.000000e+00> : vector<64x4xf32>
    %48 = tpu.matmul %46, %47, %cst_15 {dimension_numbers = #tpu.dot_dimension_numbers<[1], [0], [0], [1], [0, 0, 1, 1], [], []>} : vector<64x32xf32>, vector<32x4xf32>, vector<64x4xf32> -> vector<64x4xf32>
    %49 = vector.shape_cast %48 : vector<64x4xf32> to vector<8x8x4xf32>
    %cst_16 = arith.constant dense<0xFF800000> : vector<8x4xf32>
    %50 = vector.multi_reduction <maximumf>, %49, %cst_16 [1] : vector<8x8x4xf32> to vector<8x4xf32>
    %51 = vector.shape_cast %50 : vector<8x4xf32> to vector<8x1x4xf32>
    %52 = vector.broadcast %51 : vector<8x1x4xf32> to vector<8x8x4xf32>
    %53 = arith.subf %49, %52 : vector<8x8x4xf32>
    %54 = math.exp %53 : vector<8x8x4xf32>
    %cst_17 = arith.constant dense<0.000000e+00> : vector<8x4xf32>
    %55 = vector.multi_reduction <add>, %54, %cst_17 [1] : vector<8x8x4xf32> to vector<8x4xf32>
    %56 = vector.shape_cast %55 : vector<8x4xf32> to vector<8x1x4xf32>
    %cst_18 = arith.constant 1.000000e+00 : f32
    %57 = vector.broadcast %cst_18 : f32 to vector<8x1x4xf32>
    %58 = arith.divf %57, %56 : vector<8x1x4xf32>
    %59 = vector.broadcast %58 : vector<8x1x4xf32> to vector<8x8x4xf32>
    %60 = arith.mulf %54, %59 : vector<8x8x4xf32>
    %c0_19 = arith.constant 0 : index
    %c0_20 = arith.constant 0 : index
    %c0_21 = arith.constant 0 : index
    %61 = vector.load %arg12[%c0_19, %c0_20, %c0_21] : memref<8x8x4xf32, #tpu.memory_space<vmem>>, vector<8x8x4xf32>
    tpu.vector_store %arg12[%c0_19, %c0_20, %c0_21], %60 {strides = array<i32>} : memref<8x8x4xf32, #tpu.memory_space<vmem>>, vector<8x8x4xf32>,
    %62 = vector.shape_cast %60 : vector<8x8x4xf32> to vector<64x4xf32>
    %c0_22 = arith.constant 0 : index
    %c0_23 = arith.constant 0 : index
    %63 = vector.load %arg5[%c0_22, %c0_23] : memref<4x32xf32, #tpu.memory_space<vmem>>, vector<4x32xf32>
    %cst_24 = arith.constant dense<0.000000e+00> : vector<64x32xf32>
    %64 = tpu.matmul %62, %63, %cst_24 {dimension_numbers = #tpu.dot_dimension_numbers<[1], [0], [0], [1], [0, 0, 1, 1], [], []>} : vector<64x4xf32>, vector<4x32xf32>, vector<64x32xf32> -> vector<64x32xf32>
    %65 = vector.shape_cast %64 : vector<64x32xf32> to vector<8x8x32xf32>
    %66 = arith.mulf %65, %36 : vector<8x8x32xf32>
    %cst_25 = arith.constant dense<0.000000e+00> : vector<8x32xf32>
    %67 = vector.multi_reduction <add>, %66, %cst_25 [1] : vector<8x8x32xf32> to vector<8x32xf32>
    %68 = arith.truncf %67 : vector<8x32xf32> to vector<8x32xbf16>
    %c0_26 = arith.constant 0 : index
    %c0_27 = arith.constant 0 : index
    %69 = vector.load %arg7[%c0_26, %c0_27] : memref<32x32xbf16, #tpu.memory_space<vmem>>, vector<32x32xbf16>
    %cst_28 = arith.constant dense<0.000000e+00> : vector<8x32xf32>
    %70 = tpu.matmul %68, %69, %cst_28 {dimension_numbers = #tpu.dot_dimension_numbers<[1], [0], [0], [1], [0, 0, 1, 1], [], []>} : vector<8x32xbf16>, vector<32x32xbf16>, vector<8x32xf32> -> vector<8x32xf32>
    %71 = vector.broadcast %5 : vector<1x32xf32> to vector<8x32xf32>
    %72 = arith.addf %70, %71 : vector<8x32xf32>
    %cst_29 = arith.constant dense<0.000000e+00> : vector<8xf32>
    %73 = vector.multi_reduction <add>, %72, %cst_29 [1] : vector<8x32xf32> to vector<8xf32>
    %74 = vector.shape_cast %73 : vector<8xf32> to vector<8x1xf32>
    %cst_30 = arith.constant 3.200000e+01 : f32
    %75 = vector.broadcast %cst_30 : f32 to vector<8x1xf32>
    %76 = arith.divf %74, %75 : vector<8x1xf32>
    %77 = vector.broadcast %76 : vector<8x1xf32> to vector<8x32xf32>
    %78 = arith.subf %72, %77 : vector<8x32xf32>
    %79 = arith.mulf %78, %78 : vector<8x32xf32>
    %cst_31 = arith.constant dense<0.000000e+00> : vector<8xf32>
    %80 = vector.multi_reduction <add>, %79, %cst_31 [1] : vector<8x32xf32> to vector<8xf32>
    %81 = vector.shape_cast %80 : vector<8xf32> to vector<8x1xf32>
    %cst_32 = arith.constant 3.200000e+01 : f32
    %82 = vector.broadcast %cst_32 : f32 to vector<8x1xf32>
    %83 = arith.divf %81, %82 : vector<8x1xf32>
    %cst_33 = arith.constant 9.99999974E-6 : f32
    %84 = vector.broadcast %cst_33 : f32 to vector<8x1xf32>
    %85 = arith.addf %83, %84 : vector<8x1xf32>
    %86 = math.rsqrt %85 : vector<8x1xf32>
    %87 = vector.broadcast %86 : vector<8x1xf32> to vector<8x32xf32>
    %88 = arith.mulf %78, %87 : vector<8x32xf32>
    %89 = arith.truncf %88 : vector<8x32xf32> to vector<8x32xbf16>
    %c0_34 = arith.constant 0 : index
    %c0_35 = arith.constant 0 : index
    %90 = vector.load %arg8[%c0_34, %c0_35] : memref<32x128xbf16, #tpu.memory_space<vmem>>, vector<32x128xbf16>
    %cst_36 = arith.constant dense<0.000000e+00> : vector<8x128xf32>
    %91 = tpu.matmul %89, %90, %cst_36 {dimension_numbers = #tpu.dot_dimension_numbers<[1], [0], [0], [1], [0, 0, 1, 1], [], []>} : vector<8x32xbf16>, vector<32x128xbf16>, vector<8x128xf32> -> vector<8x128xf32>
    %c0_37 = arith.constant 0 : index
    %c0_38 = arith.constant 0 : index
    %92 = vector.load %arg9[%c0_37, %c0_38] : memref<1x128xf32, #tpu.memory_space<vmem>>, vector<1x128xf32>
    %93 = vector.broadcast %92 : vector<1x128xf32> to vector<8x128xf32>
    %94 = arith.addf %91, %93 : vector<8x128xf32>
    %cst_39 = arith.constant 0.000000e+00 : f32
    %95 = vector.broadcast %cst_39 : f32 to vector<8x128xf32>
    %96 = arith.maximumf %94, %95 : vector<8x128xf32>
    %97 = arith.truncf %96 : vector<8x128xf32> to vector<8x128xbf16>
    %c0_40 = arith.constant 0 : index
    %c0_41 = arith.constant 0 : index
    %98 = vector.load %arg10[%c0_40, %c0_41] : memref<128x32xbf16, #tpu.memory_space<vmem>>, vector<128x32xbf16>
    %cst_42 = arith.constant dense<0.000000e+00> : vector<8x32xf32>
    %99 = tpu.matmul %97, %98, %cst_42 {dimension_numbers = #tpu.dot_dimension_numbers<[1], [0], [0], [1], [0, 0, 1, 1], [], []>} : vector<8x128xbf16>, vector<128x32xbf16>, vector<8x32xf32> -> vector<8x32xf32>
    %100 = vector.broadcast %6 : vector<1x32xf32> to vector<8x32xf32>
    %101 = arith.addf %99, %100 : vector<8x32xf32>
    %c0_43 = arith.constant 0 : index
    %c0_44 = arith.constant 0 : index
    %102 = vector.load %arg11[%c0_43, %c0_44] : memref<8x32xf32, #tpu.memory_space<vmem>>, vector<8x32xf32>
    tpu.vector_store %arg11[%c0_43, %c0_44], %101 {strides = array<i32>} : memref<8x32xf32, #tpu.memory_space<vmem>>, vector<8x32xf32>,
    return
  }
  func.func @transform_0(%arg0: i32) -> (i32, i32) {
    %c0_i32 = arith.constant 0 : i32
    %c0_i32_0 = arith.constant 0 : i32
    return %arg0, %c0_i32 : i32, i32
  }
  func.func @transform_1(%arg0: i32) -> (i32, i32, i32) {
    %c0_i32 = arith.constant 0 : i32
    %c0_i32_0 = arith.constant 0 : i32
    %c0_i32_1 = arith.constant 0 : i32
    return %arg0, %c0_i32, %c0_i32_0 : i32, i32, i32
  }
  func.func @transform_2(%arg0: i32) -> (i32, i32) {
    %c0_i32 = arith.constant 0 : i32
    %c0_i32_0 = arith.constant 0 : i32
    %c0_i32_1 = arith.constant 0 : i32
    return %c0_i32, %c0_i32_0 : i32, i32
  }
  func.func @transform_3(%arg0: i32) -> (i32, i32) {
    %c0_i32 = arith.constant 0 : i32
    %c0_i32_0 = arith.constant 0 : i32
    %c0_i32_1 = arith.constant 0 : i32
    return %c0_i32, %c0_i32_0 : i32, i32
  }
  func.func @transform_4(%arg0: i32) -> (i32, i32) {
    %c0_i32 = arith.constant 0 : i32
    %c0_i32_0 = arith.constant 0 : i32
    %c0_i32_1 = arith.constant 0 : i32
    return %c0_i32, %c0_i32_0 : i32, i32
  }
  func.func @transform_5(%arg0: i32) -> (i32, i32) {
    %c0_i32 = arith.constant 0 : i32
    %c0_i32_0 = arith.constant 0 : i32
    %c0_i32_1 = arith.constant 0 : i32
    return %c0_i32, %c0_i32_0 : i32, i32
  }
  func.func @transform_6(%arg0: i32) -> (i32, i32) {
    %c0_i32 = arith.constant 0 : i32
    %c0_i32_0 = arith.constant 0 : i32
    %c0_i32_1 = arith.constant 0 : i32
    return %c0_i32, %c0_i32_0 : i32, i32
  }
  func.func @transform_7(%arg0: i32) -> (i32, i32) {
    %c0_i32 = arith.constant 0 : i32
    %c0_i32_0 = arith.constant 0 : i32
    %c0_i32_1 = arith.constant 0 : i32
    return %c0_i32, %c0_i32_0 : i32, i32
  }
  func.func @transform_8(%arg0: i32) -> (i32, i32) {
    %c0_i32 = arith.constant 0 : i32
    %c0_i32_0 = arith.constant 0 : i32
    %c0_i32_1 = arith.constant 0 : i32
    return %c0_i32, %c0_i32_0 : i32, i32
  }
  func.func @transform_9(%arg0: i32) -> (i32, i32) {
    %c0_i32 = arith.constant 0 : i32
    %c0_i32_0 = arith.constant 0 : i32
    %c0_i32_1 = arith.constant 0 : i32
    return %c0_i32, %c0_i32_0 : i32, i32
  }
  func.func @transform_10(%arg0: i32) -> (i32, i32) {
    %c0_i32 = arith.constant 0 : i32
    %c0_i32_0 = arith.constant 0 : i32
    return %arg0, %c0_i32 : i32, i32
  }
  func.func @transform_11(%arg0: i32) -> (i32, i32, i32) {
    %c0_i32 = arith.constant 0 : i32
    %c0_i32_0 = arith.constant 0 : i32
    %c0_i32_1 = arith.constant 0 : i32
    return %arg0, %c0_i32, %c0_i32_0 : i32, i32, i32
  }
}

</mosaic_0001>

<llo_original>
// kernel: tpu_custom_call.1
$region0: #{tpu_custom_call.1}
  #allocation0 [shape = 'u32[]', space=smem, size = 0x4, offset = 0x4, fixed_abs, tag = 'smem constant byte address 0x4 - core index']
  #allocation1 [shape = 'u32[144,128]{1,0:T(1,128)}', space=vmem, size = 0x12000, scoped, tag = 'internal scratch']
  %s0 = inlined_call_operand.vmem [shape: f32[8,1], index: 0, kind: input, shape index: {}]
  %s1 = inlined_call_operand.vmem [shape: bf16[8,8,32], index: 1, kind: input, shape index: {}]
  %s2 = inlined_call_operand.vmem [shape: f32[8,32], index: 2, kind: input, shape index: {}]
  %s3 = inlined_call_operand.vmem [shape: f32[32,4], index: 3, kind: input, shape index: {}]
  %s4 = inlined_call_operand.vmem [shape: f32[4,32], index: 4, kind: input, shape index: {}]
  %s5 = inlined_call_operand.vmem [shape: bf16[32,64], index: 5, kind: input, shape index: {}]
  %s6 = inlined_call_operand.vmem [shape: bf16[32,32], index: 6, kind: input, shape index: {}]
  %s7 = inlined_call_operand.vmem [shape: bf16[32,128], index: 7, kind: input, shape index: {}]
  %s8 = inlined_call_operand.vmem [shape: f32[1,128], index: 8, kind: input, shape index: {}]
  %s9 = inlined_call_operand.vmem [shape: bf16[128,32], index: 9, kind: input, shape index: {}]
  %s10 = inlined_call_operand.hbm [shape: f32[8,32], index: 10, kind: output, shape index: {0}]
  %s11 = inlined_call_operand.vmem [shape: f32[8,8,4], index: 11, kind: output, shape index: {1}]
  %12 = xla_tuple %s10, %s11
  %s13 = sld [smem:[#allocation0]]
  $region58: #{tpu_custom_call.1} parent=0
    _
  %s15 = ssub.s32 1, %s13
  %s16 = scalar_select 0, %s15, %s13
  $region1: #{tpu_custom_call.1} parent=0
    #allocation2 [shape = 'u8[4096]{0}', space=vmem, size = 0x1000, scoped, tag = 'output window, operand 0, single buffered']
    #allocation3 [shape = 's32[1]{0}', space=sflag, size = 0x4, scoped, tag = 'scoped memory for tpu_custom_call.1']
    %17 = vsyncpa [#allocation3], 0
    // Predicated region
    $region2: #{tpu_custom_call.1} parent=1 // pred_check
      _
    $region3: #{tpu_custom_call.1} parent=1 // pred_check_branch
      %19 = sbr.rel (0) target = $region5
    $region4: #{tpu_custom_call.1} parent=1 // pred_region
      _
    $region5: #{tpu_custom_call.1} parent=1 // pred_fallthru
      _
    // Predicated region
    $region6: #{tpu_custom_call.1} parent=1 // pred_check
      _
    $region7: #{tpu_custom_call.1} parent=1 // pred_check_branch
      %21 = sbr.rel (0) target = $region9
    $region8: #{tpu_custom_call.1} parent=1 // pred_region
      _
    $region9: #{tpu_custom_call.1} parent=1 // pred_fallthru
      _
    // Predicated region
    $region10: #{tpu_custom_call.1} parent=1 // pred_check
      _
    $region11: #{tpu_custom_call.1} parent=1 // pred_check_branch
      %23 = sbr.rel (0) target = $region13
    $region12: #{tpu_custom_call.1} parent=1 // pred_region
      _
    $region13: #{tpu_custom_call.1} parent=1 // pred_fallthru
      _
    // Predicated region
    $region14: #{tpu_custom_call.1} parent=1 // pred_check
      _
    $region15: #{tpu_custom_call.1} parent=1 // pred_check_branch
      %25 = sbr.rel (0) target = $region17
    $region16: #{tpu_custom_call.1} parent=1 // pred_region
      _
    $region17: #{tpu_custom_call.1} parent=1 // pred_fallthru
      _
    // Predicated region
    $region18: #{tpu_custom_call.1} parent=1 // pred_check
      _
    $region19: #{tpu_custom_call.1} parent=1 // pred_check_branch
      %27 = sbr.rel (0) target = $region21
    $region20: #{tpu_custom_call.1} parent=1 // pred_region
      _
    $region21: #{tpu_custom_call.1} parent=1 // pred_fallthru
      _
    // Predicated region
    $region22: #{tpu_custom_call.1} parent=1 // pred_check
      _
    $region23: #{tpu_custom_call.1} parent=1 // pred_check_branch
      %29 = sbr.rel (0) target = $region25
    $region24: #{tpu_custom_call.1} parent=1 // pred_region
      _
    $region25: #{tpu_custom_call.1} parent=1 // pred_fallthru
      _
    // Predicated region
    $region26: #{tpu_custom_call.1} parent=1 // pred_check
      _
    $region27: #{tpu_custom_call.1} parent=1 // pred_check_branch
      %31 = sbr.rel (0) target = $region29
    $region28: #{tpu_custom_call.1} parent=1 // pred_region
      _
    $region29: #{tpu_custom_call.1} parent=1 // pred_fallthru
      _
    // Predicated region
    $region30: #{tpu_custom_call.1} parent=1 // pred_check
      _
    $region31: #{tpu_custom_call.1} parent=1 // pred_check_branch
      %33 = sbr.rel (0) target = $region33
    $region32: #{tpu_custom_call.1} parent=1 // pred_region
      _
    $region33: #{tpu_custom_call.1} parent=1 // pred_fallthru
      _
    // Predicated region
    $region34: #{tpu_custom_call.1} parent=1 // pred_check
      _
    $region35: #{tpu_custom_call.1} parent=1 // pred_check_branch
      %35 = sbr.rel (0) target = $region37
    $region36: #{tpu_custom_call.1} parent=1 // pred_region
      _
    $region37: #{tpu_custom_call.1} parent=1 // pred_fallthru
      _
    // Predicated region
    $region38: #{tpu_custom_call.1} parent=1 // pred_check
      _
    $region39: #{tpu_custom_call.1} parent=1 // pred_check_branch
      %37 = sbr.rel (0) target = $region41
    $region40: #{tpu_custom_call.1} parent=1 // pred_region
      _
    $region41: #{tpu_custom_call.1} parent=1 // pred_fallthru
      _
    %v39 = vld [vmem:[%s2] sm:$0xff]
    %v40 = vld [vmem:[%s1] sm:$0xf]
    %v41 = vld [vmem:[%s1 + $0x4] sm:$0xf]
    %v42 = vld [vmem:[%s1 + $0x8] sm:$0xf]
    %v43 = vld [vmem:[%s1 + $0xc] sm:$0xf]
    %v44 = vld [vmem:[%s1 + $0x10] sm:$0xf]
    %v45 = vld [vmem:[%s1 + $0x14] sm:$0xf]
    %v46 = vld [vmem:[%s1 + $0x18] sm:$0xf]
    %v47 = vld [vmem:[%s1 + $0x1c] sm:$0xf]
    %v48 = vunpack.c.l.bf16 %v40
    %v49 = vunpack.c.l.bf16 %v41
    %v50 = vunpack.c.l.bf16 %v42
    %v51 = vunpack.c.l.bf16 %v43
    %v52 = vunpack.c.l.bf16 %v44
    %v53 = vunpack.c.l.bf16 %v45
    %v54 = vunpack.c.l.bf16 %v46
    %v55 = vunpack.c.l.bf16 %v47
    %vm56 = vcmask 261120
    %v57 = vsel %vm56, %v48, 0.0
    %58 = vadd.xlane.f32.xlu0 %v57
    %v59 = vpop.xlane.xlu0 %58
    %v60 = vsel %vm56, %v49, 0.0
    %61 = vadd.xlane.f32.xlu0 %v60
    %v62 = vpop.xlane.xlu0 %61
    %v63 = vsel %vm56, %v50, 0.0
    %64 = vadd.xlane.f32.xlu0 %v63
    %v65 = vpop.xlane.xlu0 %64
    %v66 = vsel %vm56, %v51, 0.0
    %67 = vadd.xlane.f32.xlu0 %v66
    %v68 = vpop.xlane.xlu0 %67
    %v69 = vsel %vm56, %v52, 0.0
    %70 = vadd.xlane.f32.xlu0 %v69
    %v71 = vpop.xlane.xlu0 %70
    %v72 = vsel %vm56, %v53, 0.0
    %73 = vadd.xlane.f32.xlu0 %v72
    %v74 = vpop.xlane.xlu0 %73
    %v75 = vsel %vm56, %v54, 0.0
    %76 = vadd.xlane.f32.xlu0 %v75
    %v77 = vpop.xlane.xlu0 %76
    %v78 = vsel %vm56, %v55, 0.0
    %79 = vadd.xlane.f32.xlu0 %v78
    %v80 = vpop.xlane.xlu0 %79
    %v81 = vrcp.pop 32.0
    %v82 = vmul.f32 %v59, %v81
    %v83 = vmul.f32 %v62, %v81
    %v84 = vmul.f32 %v65, %v81
    %v85 = vmul.f32 %v68, %v81
    %v86 = vmul.f32 %v71, %v81
    %v87 = vmul.f32 %v74, %v81
    %v88 = vmul.f32 %v77, %v81
    %v89 = vmul.f32 %v80, %v81
    %v90 = vsub.f32 %v48, %v82
    %v91 = vsub.f32 %v49, %v83
    %v92 = vsub.f32 %v50, %v84
    %v93 = vsub.f32 %v51, %v85
    %v94 = vsub.f32 %v52, %v86
    %v95 = vsub.f32 %v53, %v87
    %v96 = vsub.f32 %v54, %v88
    %v97 = vsub.f32 %v55, %v89
    %v98 = vmul.f32 %v90, %v90
    %v99 = vmul.f32 %v91, %v91
    %v100 = vmul.f32 %v92, %v92
    %v101 = vmul.f32 %v93, %v93
    %v102 = vmul.f32 %v94, %v94
    %v103 = vmul.f32 %v95, %v95
    %v104 = vmul.f32 %v96, %v96
    %v105 = vmul.f32 %v97, %v97
    %v106 = vsel %vm56, %v98, 0.0
    %107 = vadd.xlane.f32.xlu0 %v106
    %v108 = vpop.xlane.xlu0 %107
    %v109 = vsel %vm56, %v99, 0.0
    %110 = vadd.xlane.f32.xlu0 %v109
    %v111 = vpop.xlane.xlu0 %110
    %v112 = vsel %vm56, %v100, 0.0
    %113 = vadd.xlane.f32.xlu0 %v112
    %v114 = vpop.xlane.xlu0 %113
    %v115 = vsel %vm56, %v101, 0.0
    %116 = vadd.xlane.f32.xlu0 %v115
    %v117 = vpop.xlane.xlu0 %116
    %v118 = vsel %vm56, %v102, 0.0
    %119 = vadd.xlane.f32.xlu0 %v118
    %v120 = vpop.xlane.xlu0 %119
    %v121 = vsel %vm56, %v103, 0.0
    %122 = vadd.xlane.f32.xlu0 %v121
    %v123 = vpop.xlane.xlu0 %122
    %v124 = vsel %vm56, %v104, 0.0
    %125 = vadd.xlane.f32.xlu0 %v124
    %v126 = vpop.xlane.xlu0 %125
    %v127 = vsel %vm56, %v105, 0.0
    %128 = vadd.xlane.f32.xlu0 %v127
    %v129 = vpop.xlane.xlu0 %128
    %v130 = vmul.f32 %v108, %v81
    %v131 = vmul.f32 %v111, %v81
    %v132 = vmul.f32 %v114, %v81
    %v133 = vmul.f32 %v117, %v81
    %v134 = vmul.f32 %v120, %v81
    %v135 = vmul.f32 %v123, %v81
    %v136 = vmul.f32 %v126, %v81
    %v137 = vmul.f32 %v129, %v81
    %v138 = vadd.f32 %v130, 1e-05
    %v139 = vadd.f32 %v131, 1e-05
    %v140 = vadd.f32 %v132, 1e-05
    %v141 = vadd.f32 %v133, 1e-05
    %v142 = vadd.f32 %v134, 1e-05
    %v143 = vadd.f32 %v135, 1e-05
    %v144 = vadd.f32 %v136, 1e-05
    %v145 = vadd.f32 %v137, 1e-05
    %v146 = vrsqrt.pop %v138
    %v147 = vrsqrt.pop %v139
    %v148 = vrsqrt.pop %v140
    %v149 = vrsqrt.pop %v141
    %v150 = vrsqrt.pop %v142
    %v151 = vrsqrt.pop %v143
    %v152 = vrsqrt.pop %v144
    %v153 = vrsqrt.pop %v145
    %v154 = vmul.f32 %v90, %v146
    %v155 = vmul.f32 %v91, %v147
    %v156 = vmul.f32 %v92, %v148
    %v157 = vmul.f32 %v93, %v149
    %v158 = vmul.f32 %v94, %v150
    %v159 = vmul.f32 %v95, %v151
    %v160 = vmul.f32 %v96, %v152
    %v161 = vmul.f32 %v97, %v153
    %v162 = vpack.c.bf16 %v155, %v154
    %v163 = vpack.c.bf16 %v157, %v156
    %v164 = vpack.c.bf16 %v159, %v158
    %v165 = vpack.c.bf16 %v161, %v160
    %v166 = vld [vmem:[%s5] sm:$0xf]
    %v167 = vld [vmem:[%s5 + $0x4] sm:$0xf]
    %v168 = vld [vmem:[%s5 + $0x8] sm:$0xf]
    %v169 = vld [vmem:[%s5 + $0xc] sm:$0xf]
    %v174 = vunpack.c.l.b16 %v166
    %v175 = vunpack.c.l.b16 %v167
    %v176 = vunpack.c.l.b16 %v168
    %v177 = vunpack.c.l.b16 %v169
    %v178 = vpack.c.b16 %v175, %v174
    %v179 = vpack.c.b16 %v177, %v176
    %v183 = vsel %vm56, %v162, 0
    %v186 = vsel %vm56, %v163, 0
    %v189 = vsel %vm56, %v164, 0
    %v192 = vsel %vm56, %v165, 0
    %194 = vmatprep.subr.bf16.mxu0 0
    %195 = vmatpush1.bf16.msra.mxu0 0
    %196 = vmatprep.subr.bf16.mxu0 0
    %197 = vmatpush1.bf16.msra.mxu0 0
    %198 = vmatprep.subr.bf16.mxu0 0
    %199 = vmatpush1.bf16.msra.mxu0 0
    %200 = vmatprep.subr.bf16.mxu0 0
    %201 = vmatpush1.bf16.msra.mxu0 0
    %202 = vmatprep.subr.bf16.mxu0 0
    %203 = vmatpush1.bf16.msra.mxu0 0
    %204 = vmatprep.subr.bf16.mxu0 0
    %205 = vmatpush1.bf16.msra.mxu0 0
    %206 = vmatprep.subr.bf16.mxu0 0
    %207 = vmatpush1.bf16.msra.mxu0 %v179
    %208 = vmatprep.subr.bf16.mxu0 0
    %209 = vmatpush1.bf16.msra.mxu0 %v178
    %210 = vmatprep.subr.bf16.mxu0 0
    %211 = vmatpush2.bf16.msra.mxu0 0
    %212 = vmatprep.subr.bf16.mxu0 0
    %213 = vmatpush2.bf16.msra.mxu0 0
    %214 = vmatprep.subr.bf16.mxu0 0
    %215 = vmatpush2.bf16.msra.mxu0 0
    %216 = vmatprep.subr.bf16.mxu0 0
    %217 = vmatpush2.bf16.msra.mxu0 0
    %218 = vmatprep.subr.bf16.mxu0 0
    %219 = vmatpush2.bf16.msra.mxu0 0
    %220 = vmatprep.subr.bf16.mxu0 0
    %221 = vmatpush2.bf16.msra.mxu0 0
    %222 = vmatprep.subr.bf16.mxu0 0
    %223 = vmatpush2.bf16.msra.mxu0 0
    %224 = vmatprep.subr.bf16.mxu0 0
    %225 = vmatpush2.bf16.msra.mxu0 0
    %226 = vmatprep.mubr.bf16.mxu0 0
    %227 = vmatmul.mubr.bf16.gmra.mxu0 %v183
    %v228 = vpop.f32.mrf.mxu0
    %v229 = vadd.f32 0.0, %v228
    %v230 = vpop.f32.mrf.mxu0
    %v231 = vpop.f32.mrf.mxu0
    %v232 = vadd.f32 0.0, %v231
    %v233 = vpop.f32.mrf.mxu0
    %234 = vmatprep.mubr.bf16.mxu0 0
    %235 = vmatmul.mubr.bf16.gmra.mxu0 %v186
    %v236 = vpop.f32.mrf.mxu0
    %v237 = vadd.f32 0.0, %v236
    %v238 = vpop.f32.mrf.mxu0
    %v239 = vpop.f32.mrf.mxu0
    %v240 = vadd.f32 0.0, %v239
    %v241 = vpop.f32.mrf.mxu0
    %242 = vmatprep.mubr.bf16.mxu0 0
    %243 = vmatmul.mubr.bf16.gmra.mxu0 %v189
    %v244 = vpop.f32.mrf.mxu0
    %v245 = vadd.f32 0.0, %v244
    %v246 = vpop.f32.mrf.mxu0
    %v247 = vpop.f32.mrf.mxu0
    %v248 = vadd.f32 0.0, %v247
    %v249 = vpop.f32.mrf.mxu0
    %250 = vmatprep.mubr.bf16.mxu0 0
    %251 = vmatmul.mubr.bf16.gmra.mxu0 %v192
    %v252 = vpop.f32.mrf.mxu0
    %v253 = vadd.f32 0.0, %v252
    %v254 = vpop.f32.mrf.mxu0
    %v255 = vpop.f32.mrf.mxu0
    %v256 = vadd.f32 0.0, %v255
    %v257 = vpop.f32.mrf.mxu0
    %258 = vdwg.mxu0
    %v259 = vlaneseq
    %v260 = vshrl.u32 %v259, 7
    %v261 = vsub.s32 2, %v260
    %v262 = vrot.slane %v39, %v261
    %v263 = vadd.f32 %v229, %v262
    %v264 = vadd.f32 %v232, %v262
    %v265 = vadd.f32 %v237, %v262
    %v266 = vadd.f32 %v240, %v262
    %v267 = vadd.f32 %v245, %v262
    %v268 = vadd.f32 %v248, %v262
    %v269 = vadd.f32 %v253, %v262
    %v270 = vadd.f32 %v256, %v262
    %v271 = vlaneseq
    %v272 = vshrl.u32 %v271, 7
    %v273 = vsub.s32 3, %v272
    %v274 = vrot.slane %v39, %v273
    %276 = vrot.lane.b32.xlu0 %v274, 32
    %v277 = vpop.permute.xlu0 %276
    %v279 = vadd.f32 %v229, %v277
    %v280 = vadd.f32 %v232, %v277
    %v281 = vadd.f32 %v237, %v277
    %v282 = vadd.f32 %v240, %v277
    %v283 = vadd.f32 %v245, %v277
    %v284 = vadd.f32 %v248, %v277
    %v285 = vadd.f32 %v253, %v277
    %v286 = vadd.f32 %v256, %v277
    %v287 = vld [vmem:[%s0] sm:$0xff]
    %289 = vset.pattern.permute.xlu0 0
    %290 = vperm.xlu0 %289, %v287
    %v291 = vpop.permute.xlu0 %290
    %v293 = vlaneseq
    %v294 = vshrl.u32 %v293, 7
    %v295 = vsub.s32 0, %v294
    %v296 = vrot.slane %v39, %v295
    %v297 = vmul.f32 %v291, %v296
    %v298 = vlaneseq
    %v299 = vshrl.u32 %v298, 7
    %v300 = vsub.s32 1, %v299
    %v301 = vrot.slane %v39, %v300
    %v302 = vadd.f32 %v297, %v301
    %v304 = vcombine.high %v302, %v302
    %v306 = vunpack.c.l.s4 1966171168
    %v307 = vunpack.c.0.s8 %v306
    %v308 = vlaneseq
    %v309 = vshrl.u32 %v308, 7
    %v310 = vsub.s32 %v307, %v309
    %v311 = vrot.slane %v302, %v310
    %v313 = vunpack.c.l.s4 1966171168
    %v314 = vunpack.c.0.s8 %v313
    %v315 = vlaneseq
    %v316 = vshrl.u32 %v315, 7
    %v317 = vsub.s32 %v314, %v316
    %v318 = vrot.slane %v304, %v317
    %v319 = vcombine.high %v311, %v311
    %v320 = vcombine.high %v318, %v318
    %v322 = vunpack.c.l.s4 1966171168
    %v323 = vunpack.c.0.s8 %v322
    %v324 = vlaneseq
    %v325 = vshrl.u32 %v324, 7
    %v326 = vsub.s32 %v323, %v325
    %v327 = vrot.slane %v311, %v326
    %v329 = vunpack.c.l.s4 1966171168
    %v330 = vunpack.c.0.s8 %v329
    %v331 = vlaneseq
    %v332 = vshrl.u32 %v331, 7
    %v333 = vsub.s32 %v330, %v332
    %v334 = vrot.slane %v318, %v333
    %v336 = vunpack.c.l.s4 1966171168
    %v337 = vunpack.c.0.s8 %v336
    %v338 = vlaneseq
    %v339 = vshrl.u32 %v338, 7
    %v340 = vsub.s32 %v337, %v339
    %v341 = vrot.slane %v319, %v340
    %v343 = vunpack.c.l.s4 1966171168
    %v344 = vunpack.c.0.s8 %v343
    %v345 = vlaneseq
    %v346 = vshrl.u32 %v345, 7
    %v347 = vsub.s32 %v344, %v346
    %v348 = vrot.slane %v320, %v347
    %v349 = vcombine.high %v327, %v327
    %v350 = vcombine.high %v334, %v334
    %v351 = vcombine.high %v341, %v341
    %v352 = vcombine.high %v348, %v348
    %v353 = vlaneseq
    %v354 = vshrl.u32 %v353, 7
    %v355 = vsub.s32 0, %v354
    %v356 = vrot.slane %v327, %v355
    %v357 = vlaneseq
    %v358 = vshrl.u32 %v357, 7
    %v359 = vsub.s32 0, %v358
    %v360 = vrot.slane %v341, %v359
    %v361 = vlaneseq
    %v362 = vshrl.u32 %v361, 7
    %v363 = vsub.s32 0, %v362
    %v364 = vrot.slane %v349, %v363
    %v365 = vlaneseq
    %v366 = vshrl.u32 %v365, 7
    %v367 = vsub.s32 0, %v366
    %v368 = vrot.slane %v351, %v367
    %v369 = vlaneseq
    %v370 = vshrl.u32 %v369, 7
    %v371 = vsub.s32 0, %v370
    %v372 = vrot.slane %v334, %v371
    %v373 = vlaneseq
    %v374 = vshrl.u32 %v373, 7
    %v375 = vsub.s32 0, %v374
    %v376 = vrot.slane %v348, %v375
    %v377 = vlaneseq
    %v378 = vshrl.u32 %v377, 7
    %v379 = vsub.s32 0, %v378
    %v380 = vrot.slane %v350, %v379
    %v381 = vlaneseq
    %v382 = vshrl.u32 %v381, 7
    %v383 = vsub.s32 0, %v382
    %v384 = vrot.slane %v352, %v383
    %v393 = vmul.f32 %v356, %v263
    %v394 = vmul.f32 %v360, %v264
    %v395 = vmul.f32 %v364, %v265
    %v396 = vmul.f32 %v368, %v266
    %v397 = vmul.f32 %v372, %v267
    %v398 = vmul.f32 %v376, %v268
    %v399 = vmul.f32 %v380, %v269
    %v400 = vmul.f32 %v384, %v270
    %v401 = vld [vmem:[%s3] sm:$0xff]
    %v402 = vld [vmem:[%s3 + $0x8] sm:$0xff]
    %v403 = vld [vmem:[%s3 + $0x10] sm:$0xff]
    %v404 = vld [vmem:[%s3 + $0x18] sm:$0xff]
    %v406 = vsel %vm56, %v393, 0
    %v409 = vsel %vm56, %v394, 0
    %v412 = vsel %vm56, %v395, 0
    %v415 = vsel %vm56, %v396, 0
    %v418 = vsel %vm56, %v397, 0
    %v421 = vsel %vm56, %v398, 0
    %v424 = vsel %vm56, %v399, 0
    %v427 = vsel %vm56, %v400, 0
    %429 = vmatprep.subr.mxu0 0.0
    %430 = vmatpush1.msra.mxu0 0.0
    %431 = vmatprep.subr.mxu0 0.0
    %432 = vmatpush1.msra.mxu0 0.0
    %433 = vmatprep.subr.mxu0 0.0
    %434 = vmatpush1.msra.mxu0 0.0
    %435 = vmatprep.subr.mxu0 0.0
    %436 = vmatpush1.msra.mxu0 0.0
    %437 = vmatprep.subr.mxu0 0.0
    %438 = vmatpush1.msra.mxu0 0.0
    %439 = vmatprep.subr.mxu0 0.0
    %440 = vmatpush1.msra.mxu0 0.0
    %441 = vmatprep.subr.mxu0 0.0
    %442 = vmatpush1.msra.mxu0 0.0
    %443 = vmatprep.subr.mxu0 0.0
    %444 = vmatpush1.msra.mxu0 0.0
    %445 = vmatprep.subr.mxu0 0.0
    %446 = vmatpush1.msra.mxu0 0.0
    %447 = vmatprep.subr.mxu0 0.0
    %448 = vmatpush1.msra.mxu0 0.0
    %449 = vmatprep.subr.mxu0 0.0
    %450 = vmatpush1.msra.mxu0 0.0
    %451 = vmatprep.subr.mxu0 0.0
    %452 = vmatpush1.msra.mxu0 0.0
    %453 = vmatprep.subr.mxu0 0.0
    %454 = vmatpush1.msra.mxu0 %v404
    %455 = vmatprep.subr.mxu0 0.0
    %456 = vmatpush1.msra.mxu0 %v403
    %457 = vmatprep.subr.mxu0 0.0
    %458 = vmatpush1.msra.mxu0 %v402
    %459 = vmatprep.subr.mxu0 0.0
    %460 = vmatpush1.msra.mxu0 %v401
    %461 = vmatprep.subr.mxu0 0.0
    %462 = vmatpush2.msra.mxu0 0.0
    %463 = vmatprep.subr.mxu0 0.0
    %464 = vmatpush2.msra.mxu0 0.0
    %465 = vmatprep.subr.mxu0 0.0
    %466 = vmatpush2.msra.mxu0 0.0
    %467 = vmatprep.subr.mxu0 0.0
    %468 = vmatpush2.msra.mxu0 0.0
    %469 = vmatprep.subr.mxu0 0.0
    %470 = vmatpush2.msra.mxu0 0.0
    %471 = vmatprep.subr.mxu0 0.0
    %472 = vmatpush2.msra.mxu0 0.0
    %473 = vmatprep.subr.mxu0 0.0
    %474 = vmatpush2.msra.mxu0 0.0
    %475 = vmatprep.subr.mxu0 0.0
    %476 = vmatpush2.msra.mxu0 0.0
    %477 = vmatprep.subr.mxu0 0.0
    %478 = vmatpush2.msra.mxu0 0.0
    %479 = vmatprep.subr.mxu0 0.0
    %480 = vmatpush2.msra.mxu0 0.0
    %481 = vmatprep.subr.mxu0 0.0
    %482 = vmatpush2.msra.mxu0 0.0
    %483 = vmatprep.subr.mxu0 0.0
    %484 = vmatpush2.msra.mxu0 0.0
    %485 = vmatprep.subr.mxu0 0.0
    %486 = vmatpush2.msra.mxu0 0.0
    %487 = vmatprep.subr.mxu0 0.0
    %488 = vmatpush2.msra.mxu0 0.0
    %489 = vmatprep.subr.mxu0 0.0
    %490 = vmatpush2.msra.mxu0 0.0
    %491 = vmatprep.subr.mxu0 0.0
    %492 = vmatpush2.msra.mxu0 0.0
    %493 = vmatprep.mubr.f32.mxu0 0.0
    %494 = vmatmul.mubr.f32.gmra.mxu0 %v406
    %v495 = vpop.f32.mrf.mxu0
    %v496 = vadd.f32 0.0, %v495
    %v497 = vpop.f32.mrf.mxu0
    %498 = vmatprep.mubr.f32.mxu0 0.0
    %499 = vmatmul.mubr.f32.gmra.mxu0 %v409
    %v500 = vpop.f32.mrf.mxu0
    %v501 = vadd.f32 0.0, %v500
    %v502 = vpop.f32.mrf.mxu0
    %503 = vmatprep.mubr.f32.mxu0 0.0
    %504 = vmatmul.mubr.f32.gmra.mxu0 %v412
    %v505 = vpop.f32.mrf.mxu0
    %v506 = vadd.f32 0.0, %v505
    %v507 = vpop.f32.mrf.mxu0
    %508 = vmatprep.mubr.f32.mxu0 0.0
    %509 = vmatmul.mubr.f32.gmra.mxu0 %v415
    %v510 = vpop.f32.mrf.mxu0
    %v511 = vadd.f32 0.0, %v510
    %v512 = vpop.f32.mrf.mxu0
    %513 = vmatprep.mubr.f32.mxu0 0.0
    %514 = vmatmul.mubr.f32.gmra.mxu0 %v418
    %v515 = vpop.f32.mrf.mxu0
    %v516 = vadd.f32 0.0, %v515
    %v517 = vpop.f32.mrf.mxu0
    %518 = vmatprep.mubr.f32.mxu0 0.0
    %519 = vmatmul.mubr.f32.gmra.mxu0 %v421
    %v520 = vpop.f32.mrf.mxu0
    %v521 = vadd.f32 0.0, %v520
    %v522 = vpop.f32.mrf.mxu0
    %523 = vmatprep.mubr.f32.mxu0 0.0
    %524 = vmatmul.mubr.f32.gmra.mxu0 %v424
    %v525 = vpop.f32.mrf.mxu0
    %v526 = vadd.f32 0.0, %v525
    %v527 = vpop.f32.mrf.mxu0
    %528 = vmatprep.mubr.f32.mxu0 0.0
    %529 = vmatmul.mubr.f32.gmra.mxu0 %v427
    %v530 = vpop.f32.mrf.mxu0
    %v531 = vadd.f32 0.0, %v530
    %v532 = vpop.f32.mrf.mxu0
    %533 = vdwg.mxu0
    %vm534 = vcmask 31744
    %v535 = vsel %vm534, %v496, -inf
    %v536 = vrot.slane %v535, 4
    %v537 = vmax.f32 %v535, %v536
    %v538 = vrot.slane %v537, 2
    %v539 = vmax.f32 %v537, %v538
    %v540 = vrot.slane %v539, 1
    %v541 = vmax.f32 %v539, %v540
    %v542 = vsel %vm534, %v501, -inf
    %v543 = vrot.slane %v542, 4
    %v544 = vmax.f32 %v542, %v543
    %v545 = vrot.slane %v544, 2
    %v546 = vmax.f32 %v544, %v545
    %v547 = vrot.slane %v546, 1
    %v548 = vmax.f32 %v546, %v547
    %v549 = vsel %vm534, %v506, -inf
    %v550 = vrot.slane %v549, 4
    %v551 = vmax.f32 %v549, %v550
    %v552 = vrot.slane %v551, 2
    %v553 = vmax.f32 %v551, %v552
    %v554 = vrot.slane %v553, 1
    %v555 = vmax.f32 %v553, %v554
    %v556 = vsel %vm534, %v511, -inf
    %v557 = vrot.slane %v556, 4
    %v558 = vmax.f32 %v556, %v557
    %v559 = vrot.slane %v558, 2
    %v560 = vmax.f32 %v558, %v559
    %v561 = vrot.slane %v560, 1
    %v562 = vmax.f32 %v560, %v561
    %v563 = vsel %vm534, %v516, -inf
    %v564 = vrot.slane %v563, 4
    %v565 = vmax.f32 %v563, %v564
    %v566 = vrot.slane %v565, 2
    %v567 = vmax.f32 %v565, %v566
    %v568 = vrot.slane %v567, 1
    %v569 = vmax.f32 %v567, %v568
    %v570 = vsel %vm534, %v521, -inf
    %v571 = vrot.slane %v570, 4
    %v572 = vmax.f32 %v570, %v571
    %v573 = vrot.slane %v572, 2
    %v574 = vmax.f32 %v572, %v573
    %v575 = vrot.slane %v574, 1
    %v576 = vmax.f32 %v574, %v575
    %v577 = vsel %vm534, %v526, -inf
    %v578 = vrot.slane %v577, 4
    %v579 = vmax.f32 %v577, %v578
    %v580 = vrot.slane %v579, 2
    %v581 = vmax.f32 %v579, %v580
    %v582 = vrot.slane %v581, 1
    %v583 = vmax.f32 %v581, %v582
    %v584 = vsel %vm534, %v531, -inf
    %v585 = vrot.slane %v584, 4
    %v586 = vmax.f32 %v584, %v585
    %v587 = vrot.slane %v586, 2
    %v588 = vmax.f32 %v586, %v587
    %v589 = vrot.slane %v588, 1
    %v590 = vmax.f32 %v588, %v589
    %v591 = vsub.f32 %v496, %v541
    %v592 = vsub.f32 %v501, %v548
    %v593 = vsub.f32 %v506, %v555
    %v594 = vsub.f32 %v511, %v562
    %v595 = vsub.f32 %v516, %v569
    %v596 = vsub.f32 %v521, %v576
    %v597 = vsub.f32 %v526, %v583
    %v598 = vsub.f32 %v531, %v590
    %v599 = vmul.f32 %v591, 1.442695
    %v600 = vpow.pop %v599
    %v601 = vmul.f32 %v592, 1.442695
    %v602 = vpow.pop %v601
    %v603 = vmul.f32 %v593, 1.442695
    %v604 = vpow.pop %v603
    %v605 = vmul.f32 %v594, 1.442695
    %v606 = vpow.pop %v605
    %v607 = vmul.f32 %v595, 1.442695
    %v608 = vpow.pop %v607
    %v609 = vmul.f32 %v596, 1.442695
    %v610 = vpow.pop %v609
    %v611 = vmul.f32 %v597, 1.442695
    %v612 = vpow.pop %v611
    %v613 = vmul.f32 %v598, 1.442695
    %v614 = vpow.pop %v613
    %v615 = vsel %vm534, %v600, 0.0
    %v616 = vrot.slane %v615, 4
    %v617 = vadd.f32 %v615, %v616
    %v618 = vrot.slane %v617, 2
    %v619 = vadd.f32 %v617, %v618
    %v620 = vrot.slane %v619, 1
    %v621 = vadd.f32 %v619, %v620
    %v622 = vsel %vm534, %v602, 0.0
    %v623 = vrot.slane %v622, 4
    %v624 = vadd.f32 %v622, %v623
    %v625 = vrot.slane %v624, 2
    %v626 = vadd.f32 %v624, %v625
    %v627 = vrot.slane %v626, 1
    %v628 = vadd.f32 %v626, %v627
    %v629 = vsel %vm534, %v604, 0.0
    %v630 = vrot.slane %v629, 4
    %v631 = vadd.f32 %v629, %v630
    %v632 = vrot.slane %v631, 2
    %v633 = vadd.f32 %v631, %v632
    %v634 = vrot.slane %v633, 1
    %v635 = vadd.f32 %v633, %v634
    %v636 = vsel %vm534, %v606, 0.0
    %v637 = vrot.slane %v636, 4
    %v638 = vadd.f32 %v636, %v637
    %v639 = vrot.slane %v638, 2
    %v640 = vadd.f32 %v638, %v639
    %v641 = vrot.slane %v640, 1
    %v642 = vadd.f32 %v640, %v641
    %v643 = vsel %vm534, %v608, 0.0
    %v644 = vrot.slane %v643, 4
    %v645 = vadd.f32 %v643, %v644
    %v646 = vrot.slane %v645, 2
    %v647 = vadd.f32 %v645, %v646
    %v648 = vrot.slane %v647, 1
    %v649 = vadd.f32 %v647, %v648
    %v650 = vsel %vm534, %v610, 0.0
    %v651 = vrot.slane %v650, 4
    %v652 = vadd.f32 %v650, %v651
    %v653 = vrot.slane %v652, 2
    %v654 = vadd.f32 %v652, %v653
    %v655 = vrot.slane %v654, 1
    %v656 = vadd.f32 %v654, %v655
    %v657 = vsel %vm534, %v612, 0.0
    %v658 = vrot.slane %v657, 4
    %v659 = vadd.f32 %v657, %v658
    %v660 = vrot.slane %v659, 2
    %v661 = vadd.f32 %v659, %v660
    %v662 = vrot.slane %v661, 1
    %v663 = vadd.f32 %v661, %v662
    %v664 = vsel %vm534, %v614, 0.0
    %v665 = vrot.slane %v664, 4
    %v666 = vadd.f32 %v664, %v665
    %v667 = vrot.slane %v666, 2
    %v668 = vadd.f32 %v666, %v667
    %v669 = vrot.slane %v668, 1
    %v670 = vadd.f32 %v668, %v669
    %v671 = vrcp.pop %v621
    %v672 = vmul.f32 1.0, %v671
    %v673 = vrcp.pop %v628
    %v674 = vmul.f32 1.0, %v673
    %v675 = vrcp.pop %v635
    %v676 = vmul.f32 1.0, %v675
    %v677 = vrcp.pop %v642
    %v678 = vmul.f32 1.0, %v677
    %v679 = vrcp.pop %v649
    %v680 = vmul.f32 1.0, %v679
    %v681 = vrcp.pop %v656
    %v682 = vmul.f32 1.0, %v681
    %v683 = vrcp.pop %v663
    %v684 = vmul.f32 1.0, %v683
    %v685 = vrcp.pop %v670
    %v686 = vmul.f32 1.0, %v685
    %v687 = vmul.f32 %v600, %v672
    %v688 = vmul.f32 %v602, %v674
    %v689 = vmul.f32 %v604, %v676
    %v690 = vmul.f32 %v606, %v678
    %v691 = vmul.f32 %v608, %v680
    %v692 = vmul.f32 %v610, %v682
    %v693 = vmul.f32 %v612, %v684
    %v694 = vmul.f32 %v614, %v686
    %695 = vst.msk [vmem:[%s11] sm:$0xff] %vm534, %v687
    %696 = vst.msk [vmem:[%s11 + $0x8] sm:$0xff] %vm534, %v688
    %697 = vst.msk [vmem:[%s11 + $0x10] sm:$0xff] %vm534, %v689
    %698 = vst.msk [vmem:[%s11 + $0x18] sm:$0xff] %vm534, %v690
    %699 = vst.msk [vmem:[%s11 + $0x20] sm:$0xff] %vm534, %v691
    %700 = vst.msk [vmem:[%s11 + $0x28] sm:$0xff] %vm534, %v692
    %701 = vst.msk [vmem:[%s11 + $0x30] sm:$0xff] %vm534, %v693
    %702 = vst.msk [vmem:[%s11 + $0x38] sm:$0xff] %vm534, %v694
    %v703 = vld [vmem:[%s4] sm:$0xf]
    %v705 = vsel %vm534, %v687, 0
    %v708 = vsel %vm534, %v688, 0
    %v711 = vsel %vm534, %v689, 0
    %v714 = vsel %vm534, %v690, 0
    %v717 = vsel %vm534, %v691, 0
    %v720 = vsel %vm534, %v692, 0
    %v723 = vsel %vm534, %v693, 0
    %v726 = vsel %vm534, %v694, 0
    %vm728 = vcmask 1043456
    %v730 = vsel %vm728, %v703, 0
    %732 = vmatprep.subr.mxu0 0.0
    %733 = vmatpush1.msra.mxu0 0.0
    %734 = vmatprep.subr.mxu0 0.0
    %735 = vmatpush1.msra.mxu0 0.0
    %736 = vmatprep.subr.mxu0 0.0
    %737 = vmatpush1.msra.mxu0 0.0
    %738 = vmatprep.subr.mxu0 0.0
    %739 = vmatpush1.msra.mxu0 0.0
    %740 = vmatprep.subr.mxu0 0.0
    %741 = vmatpush1.msra.mxu0 0.0
    %742 = vmatprep.subr.mxu0 0.0
    %743 = vmatpush1.msra.mxu0 0.0
    %744 = vmatprep.subr.mxu0 0.0
    %745 = vmatpush1.msra.mxu0 0.0
    %746 = vmatprep.subr.mxu0 0.0
    %747 = vmatpush1.msra.mxu0 0.0
    %748 = vmatprep.subr.mxu0 0.0
    %749 = vmatpush1.msra.mxu0 0.0
    %750 = vmatprep.subr.mxu0 0.0
    %751 = vmatpush1.msra.mxu0 0.0
    %752 = vmatprep.subr.mxu0 0.0
    %753 = vmatpush1.msra.mxu0 0.0
    %754 = vmatprep.subr.mxu0 0.0
    %755 = vmatpush1.msra.mxu0 0.0
    %756 = vmatprep.subr.mxu0 0.0
    %757 = vmatpush1.msra.mxu0 0.0
    %758 = vmatprep.subr.mxu0 0.0
    %759 = vmatpush1.msra.mxu0 0.0
    %760 = vmatprep.subr.mxu0 0.0
    %761 = vmatpush1.msra.mxu0 0.0
    %762 = vmatprep.subr.mxu0 0.0
    %763 = vmatpush1.msra.mxu0 %v730
    %764 = vmatprep.subr.mxu0 0.0
    %765 = vmatpush2.msra.mxu0 0.0
    %766 = vmatprep.subr.mxu0 0.0
    %767 = vmatpush2.msra.mxu0 0.0
    %768 = vmatprep.subr.mxu0 0.0
    %769 = vmatpush2.msra.mxu0 0.0
    %770 = vmatprep.subr.mxu0 0.0
    %771 = vmatpush2.msra.mxu0 0.0
    %772 = vmatprep.subr.mxu0 0.0
    %773 = vmatpush2.msra.mxu0 0.0
    %774 = vmatprep.subr.mxu0 0.0
    %775 = vmatpush2.msra.mxu0 0.0
    %776 = vmatprep.subr.mxu0 0.0
    %777 = vmatpush2.msra.mxu0 0.0
    %778 = vmatprep.subr.mxu0 0.0
    %779 = vmatpush2.msra.mxu0 0.0
    %780 = vmatprep.subr.mxu0 0.0
    %781 = vmatpush2.msra.mxu0 0.0
    %782 = vmatprep.subr.mxu0 0.0
    %783 = vmatpush2.msra.mxu0 0.0
    %784 = vmatprep.subr.mxu0 0.0
    %785 = vmatpush2.msra.mxu0 0.0
    %786 = vmatprep.subr.mxu0 0.0
    %787 = vmatpush2.msra.mxu0 0.0
    %788 = vmatprep.subr.mxu0 0.0
    %789 = vmatpush2.msra.mxu0 0.0
    %790 = vmatprep.subr.mxu0 0.0
    %791 = vmatpush2.msra.mxu0 0.0
    %792 = vmatprep.subr.mxu0 0.0
    %793 = vmatpush2.msra.mxu0 0.0
    %794 = vmatprep.subr.mxu0 0.0
    %795 = vmatpush2.msra.mxu0 0.0
    %796 = vmatprep.mubr.f32.mxu0 0.0
    %797 = vmatmul.mubr.f32.gmra.mxu0 %v705
    %v798 = vpop.f32.mrf.mxu0
    %v799 = vadd.f32 0.0, %v798
    %v800 = vpop.f32.mrf.mxu0
    %801 = vmatprep.mubr.f32.mxu0 0.0
    %802 = vmatmul.mubr.f32.gmra.mxu0 %v708
    %v803 = vpop.f32.mrf.mxu0
    %v804 = vadd.f32 0.0, %v803
    %v805 = vpop.f32.mrf.mxu0
    %806 = vmatprep.mubr.f32.mxu0 0.0
    %807 = vmatmul.mubr.f32.gmra.mxu0 %v711
    %v808 = vpop.f32.mrf.mxu0
    %v809 = vadd.f32 0.0, %v808
    %v810 = vpop.f32.mrf.mxu0
    %811 = vmatprep.mubr.f32.mxu0 0.0
    %812 = vmatmul.mubr.f32.gmra.mxu0 %v714
    %v813 = vpop.f32.mrf.mxu0
    %v814 = vadd.f32 0.0, %v813
    %v815 = vpop.f32.mrf.mxu0
    %816 = vmatprep.mubr.f32.mxu0 0.0
    %817 = vmatmul.mubr.f32.gmra.mxu0 %v717
    %v818 = vpop.f32.mrf.mxu0
    %v819 = vadd.f32 0.0, %v818
    %v820 = vpop.f32.mrf.mxu0
    %821 = vmatprep.mubr.f32.mxu0 0.0
    %822 = vmatmul.mubr.f32.gmra.mxu0 %v720
    %v823 = vpop.f32.mrf.mxu0
    %v824 = vadd.f32 0.0, %v823
    %v825 = vpop.f32.mrf.mxu0
    %826 = vmatprep.mubr.f32.mxu0 0.0
    %827 = vmatmul.mubr.f32.gmra.mxu0 %v723
    %v828 = vpop.f32.mrf.mxu0
    %v829 = vadd.f32 0.0, %v828
    %v830 = vpop.f32.mrf.mxu0
    %831 = vmatprep.mubr.f32.mxu0 0.0
    %832 = vmatmul.mubr.f32.gmra.mxu0 %v726
    %v833 = vpop.f32.mrf.mxu0
    %v834 = vadd.f32 0.0, %v833
    %v835 = vpop.f32.mrf.mxu0
    %836 = vdwg.mxu0
    %845 = vrot.lane.b32.xlu0 %v279, 96
    %v846 = vpop.permute.xlu0 %845
    %847 = vrot.lane.b32.xlu0 %v280, 96
    %v848 = vpop.permute.xlu0 %847
    %849 = vrot.lane.b32.xlu0 %v281, 96
    %v850 = vpop.permute.xlu0 %849
    %851 = vrot.lane.b32.xlu0 %v282, 96
    %v852 = vpop.permute.xlu0 %851
    %853 = vrot.lane.b32.xlu0 %v283, 96
    %v854 = vpop.permute.xlu0 %853
    %855 = vrot.lane.b32.xlu0 %v284, 96
    %v856 = vpop.permute.xlu0 %855
    %857 = vrot.lane.b32.xlu0 %v285, 96
    %v858 = vpop.permute.xlu0 %857
    %859 = vrot.lane.b32.xlu0 %v286, 96
    %v860 = vpop.permute.xlu0 %859
    %v869 = vmul.f32 %v799, %v846
    %v870 = vmul.f32 %v804, %v848
    %v871 = vmul.f32 %v809, %v850
    %v872 = vmul.f32 %v814, %v852
    %v873 = vmul.f32 %v819, %v854
    %v874 = vmul.f32 %v824, %v856
    %v875 = vmul.f32 %v829, %v858
    %v876 = vmul.f32 %v834, %v860
    %v877 = vsel %vm56, %v869, 0.0
    %v878 = vrot.slane %v877, 4
    %v879 = vadd.f32 %v877, %v878
    %v880 = vrot.slane %v879, 2
    %v881 = vadd.f32 %v879, %v880
    %v882 = vrot.slane %v881, 1
    %v883 = vadd.f32 %v881, %v882
    %v884 = vsel %vm56, %v870, 0.0
    %v885 = vrot.slane %v884, 4
    %v886 = vadd.f32 %v884, %v885
    %v887 = vrot.slane %v886, 2
    %v888 = vadd.f32 %v886, %v887
    %v889 = vrot.slane %v888, 1
    %v890 = vadd.f32 %v888, %v889
    %v891 = vsel %vm56, %v871, 0.0
    %v892 = vrot.slane %v891, 4
    %v893 = vadd.f32 %v891, %v892
    %v894 = vrot.slane %v893, 2
    %v895 = vadd.f32 %v893, %v894
    %v896 = vrot.slane %v895, 1
    %v897 = vadd.f32 %v895, %v896
    %v898 = vsel %vm56, %v872, 0.0
    %v899 = vrot.slane %v898, 4
    %v900 = vadd.f32 %v898, %v899
    %v901 = vrot.slane %v900, 2
    %v902 = vadd.f32 %v900, %v901
    %v903 = vrot.slane %v902, 1
    %v904 = vadd.f32 %v902, %v903
    %v905 = vsel %vm56, %v873, 0.0
    %v906 = vrot.slane %v905, 4
    %v907 = vadd.f32 %v905, %v906
    %v908 = vrot.slane %v907, 2
    %v909 = vadd.f32 %v907, %v908
    %v910 = vrot.slane %v909, 1
    %v911 = vadd.f32 %v909, %v910
    %v912 = vsel %vm56, %v874, 0.0
    %v913 = vrot.slane %v912, 4
    %v914 = vadd.f32 %v912, %v913
    %v915 = vrot.slane %v914, 2
    %v916 = vadd.f32 %v914, %v915
    %v917 = vrot.slane %v916, 1
    %v918 = vadd.f32 %v916, %v917
    %v919 = vsel %vm56, %v875, 0.0
    %v920 = vrot.slane %v919, 4
    %v921 = vadd.f32 %v919, %v920
    %v922 = vrot.slane %v921, 2
    %v923 = vadd.f32 %v921, %v922
    %v924 = vrot.slane %v923, 1
    %v925 = vadd.f32 %v923, %v924
    %v926 = vsel %vm56, %v876, 0.0
    %v927 = vrot.slane %v926, 4
    %v928 = vadd.f32 %v926, %v927
    %v929 = vrot.slane %v928, 2
    %v930 = vadd.f32 %v928, %v929
    %v931 = vrot.slane %v930, 1
    %v932 = vadd.f32 %v930, %v931
    %v933 = vpack.c.bf16 %v883, %v883
    %v934 = vpack.c.bf16 %v890, %v890
    %v935 = vpack.c.bf16 %v897, %v897
    %v936 = vpack.c.bf16 %v904, %v904
    %v937 = vpack.c.bf16 %v911, %v911
    %v938 = vpack.c.bf16 %v918, %v918
    %v939 = vpack.c.bf16 %v925, %v925
    %v940 = vpack.c.bf16 %v932, %v932
    %v941 = vld [vmem:[%s6] sm:$0xf]
    %v942 = vld [vmem:[%s6 + $0x4] sm:$0xf]
    %v943 = vld [vmem:[%s6 + $0x8] sm:$0xf]
    %v944 = vld [vmem:[%s6 + $0xc] sm:$0xf]
    %v945 = vlaneseq
    %v946 = vshrl.u32 %v945, 7
    %v947 = vsub.s32 4, %v946
    %v948 = vrot.slane %v39, %v947
    %v957 = vunpack.c.l.b16 %v933
    %v958 = vunpack.c.l.b16 %v934
    %v959 = vunpack.c.l.b16 %v935
    %v960 = vunpack.c.l.b16 %v936
    %v961 = vunpack.c.l.b16 %v937
    %v962 = vunpack.c.l.b16 %v938
    %v963 = vunpack.c.l.b16 %v939
    %v964 = vunpack.c.l.b16 %v940
    %vm965 = vcmask 1041409
    %v966 = vsel %vm965, %v958, %v957
    %vm967 = vcmask 1042434
    %v968 = vsel %vm967, %v959, %v966
    %vm969 = vcmask 1043459
    %v970 = vsel %vm969, %v960, %v968
    %vm971 = vcmask 1044484
    %v972 = vsel %vm971, %v961, %v970
    %vm973 = vcmask 1045509
    %v974 = vsel %vm973, %v962, %v972
    %vm975 = vcmask 1046534
    %v976 = vsel %vm975, %v963, %v974
    %vm977 = vcmask 1047559
    %v978 = vsel %vm977, %v964, %v976
    %v979 = vpack.c.b16 %v978, %v978
    %v984 = vunpack.c.l.b16 %v941
    %v985 = vunpack.c.l.b16 %v942
    %v986 = vunpack.c.l.b16 %v943
    %v987 = vunpack.c.l.b16 %v944
    %v988 = vpack.c.b16 %v985, %v984
    %v989 = vpack.c.b16 %v987, %v986
    %v993 = vsel %vm56, %v979, 0
    %995 = vmatprep.subr.bf16.mxu0 0
    %996 = vmatpush1.bf16.msra.mxu0 0
    %997 = vmatprep.subr.bf16.mxu0 0
    %998 = vmatpush1.bf16.msra.mxu0 0
    %999 = vmatprep.subr.bf16.mxu0 0
    %1000 = vmatpush1.bf16.msra.mxu0 0
    %1001 = vmatprep.subr.bf16.mxu0 0
    %1002 = vmatpush1.bf16.msra.mxu0 0
    %1003 = vmatprep.subr.bf16.mxu0 0
    %1004 = vmatpush1.bf16.msra.mxu0 0
    %1005 = vmatprep.subr.bf16.mxu0 0
    %1006 = vmatpush1.bf16.msra.mxu0 0
    %1007 = vmatprep.subr.bf16.mxu0 0
    %1008 = vmatpush1.bf16.msra.mxu0 %v989
    %1009 = vmatprep.subr.bf16.mxu0 0
    %1010 = vmatpush1.bf16.msra.mxu0 %v988
    %1011 = vmatprep.subr.bf16.mxu0 0
    %1012 = vmatpush2.bf16.msra.mxu0 0
    %1013 = vmatprep.subr.bf16.mxu0 0
    %1014 = vmatpush2.bf16.msra.mxu0 0
    %1015 = vmatprep.subr.bf16.mxu0 0
    %1016 = vmatpush2.bf16.msra.mxu0 0
    %1017 = vmatprep.subr.bf16.mxu0 0
    %1018 = vmatpush2.bf16.msra.mxu0 0
    %1019 = vmatprep.subr.bf16.mxu0 0
    %1020 = vmatpush2.bf16.msra.mxu0 0
    %1021 = vmatprep.subr.bf16.mxu0 0
    %1022 = vmatpush2.bf16.msra.mxu0 0
    %1023 = vmatprep.subr.bf16.mxu0 0
    %1024 = vmatpush2.bf16.msra.mxu0 0
    %1025 = vmatprep.subr.bf16.mxu0 0
    %1026 = vmatpush2.bf16.msra.mxu0 0
    %1027 = vmatprep.mubr.bf16.mxu0 0
    %1028 = vmatmul.mubr.bf16.gmra.mxu0 %v993
    %v1029 = vpop.f32.mrf.mxu0
    %v1030 = vadd.f32 %v948, %v1029
    %v1031 = vpop.f32.mrf.mxu0
    %v1032 = vpop.f32.mrf.mxu0
    %v1033 = vpop.f32.mrf.mxu0
    %1034 = vdwg.mxu0
    %v1035 = vsel %vm56, %v1030, 0.0
    %1036 = vadd.xlane.f32.xlu0 %v1035
    %v1037 = vpop.xlane.xlu0 %1036
    %v1038 = vmul.f32 %v1037, %v81
    %v1039 = vsub.f32 %v1030, %v1038
    %v1040 = vmul.f32 %v1039, %v1039
    %v1041 = vsel %vm56, %v1040, 0.0
    %1042 = vadd.xlane.f32.xlu0 %v1041
    %v1043 = vpop.xlane.xlu0 %1042
    %v1044 = vmul.f32 %v1043, %v81
    %v1045 = vadd.f32 %v1044, 1e-05
    %v1046 = vrsqrt.pop %v1045
    %v1047 = vmul.f32 %v1039, %v1046
    %v1048 = vpack.c.bf16 %v1047, %v1047
    %v1049 = vld [vmem:[%s7] sm:$0xf]
    %v1050 = vld [vmem:[%s7 + $0x4] sm:$0xf]
    %v1051 = vld [vmem:[%s7 + $0x8] sm:$0xf]
    %v1052 = vld [vmem:[%s7 + $0xc] sm:$0xf]
    %v1053 = vld [vmem:[%s8] sm:$0x1]
    %v1055 = vlaneseq
    %v1056 = vshrl.u32 %v1055, 7
    %v1057 = vsub.s32 0, %v1056
    %v1058 = vrot.slane %v1053, %v1057
    %v1064 = vunpack.c.l.b16 %v1049
    %v1065 = vunpack.c.l.b16 %v1050
    %v1066 = vunpack.c.l.b16 %v1051
    %v1067 = vunpack.c.l.b16 %v1052
    %v1068 = vpack.c.b16 %v1065, %v1064
    %v1069 = vpack.c.b16 %v1067, %v1066
    %v1073 = vsel %vm56, %v1048, 0
    %1075 = vmatprep.subr.bf16.mxu0 0
    %1076 = vmatpush1.bf16.msra.mxu0 0
    %1077 = vmatprep.subr.bf16.mxu0 0
    %1078 = vmatpush1.bf16.msra.mxu0 0
    %1079 = vmatprep.subr.bf16.mxu0 0
    %1080 = vmatpush1.bf16.msra.mxu0 0
    %1081 = vmatprep.subr.bf16.mxu0 0
    %1082 = vmatpush1.bf16.msra.mxu0 0
    %1083 = vmatprep.subr.bf16.mxu0 0
    %1084 = vmatpush1.bf16.msra.mxu0 0
    %1085 = vmatprep.subr.bf16.mxu0 0
    %1086 = vmatpush1.bf16.msra.mxu0 0
    %1087 = vmatprep.subr.bf16.mxu0 0
    %1088 = vmatpush1.bf16.msra.mxu0 %v1069
    %1089 = vmatprep.subr.bf16.mxu0 0
    %1090 = vmatpush1.bf16.msra.mxu0 %v1068
    %1091 = vmatprep.subr.bf16.mxu0 0
    %1092 = vmatpush2.bf16.msra.mxu0 0
    %1093 = vmatprep.subr.bf16.mxu0 0
    %1094 = vmatpush2.bf16.msra.mxu0 0
    %1095 = vmatprep.subr.bf16.mxu0 0
    %1096 = vmatpush2.bf16.msra.mxu0 0
    %1097 = vmatprep.subr.bf16.mxu0 0
    %1098 = vmatpush2.bf16.msra.mxu0 0
    %1099 = vmatprep.subr.bf16.mxu0 0
    %1100 = vmatpush2.bf16.msra.mxu0 0
    %1101 = vmatprep.subr.bf16.mxu0 0
    %1102 = vmatpush2.bf16.msra.mxu0 0
    %1103 = vmatprep.subr.bf16.mxu0 0
    %1104 = vmatpush2.bf16.msra.mxu0 0
    %1105 = vmatprep.subr.bf16.mxu0 0
    %1106 = vmatpush2.bf16.msra.mxu0 0
    %1107 = vmatprep.mubr.bf16.mxu0 0
    %1108 = vmatmul.mubr.bf16.gmra.mxu0 %v1073
    %v1109 = vpop.f32.mrf.mxu0
    %v1110 = vadd.f32 %v1058, %v1109
    %v1111 = vpop.f32.mrf.mxu0
    %v1112 = vpop.f32.mrf.mxu0
    %v1113 = vpop.f32.mrf.mxu0
    %1114 = vdwg.mxu0
    %v1115 = vmax.f32 %v1110, 0.0
    %v1116 = vpack.c.bf16 %v1115, %v1115
    %v1117 = vld [vmem:[%s9] sm:$0xf]
    %v1118 = vld [vmem:[%s9 + $0x4] sm:$0xf]
    %v1119 = vld [vmem:[%s9 + $0x8] sm:$0xf]
    %v1120 = vld [vmem:[%s9 + $0xc] sm:$0xf]
    %v1121 = vld [vmem:[%s9 + $0x10] sm:$0xf]
    %v1122 = vld [vmem:[%s9 + $0x14] sm:$0xf]
    %v1123 = vld [vmem:[%s9 + $0x18] sm:$0xf]
    %v1124 = vld [vmem:[%s9 + $0x1c] sm:$0xf]
    %v1125 = vld [vmem:[%s9 + $0x20] sm:$0xf]
    %v1126 = vld [vmem:[%s9 + $0x24] sm:$0xf]
    %v1127 = vld [vmem:[%s9 + $0x28] sm:$0xf]
    %v1128 = vld [vmem:[%s9 + $0x2c] sm:$0xf]
    %v1129 = vld [vmem:[%s9 + $0x30] sm:$0xf]
    %v1130 = vld [vmem:[%s9 + $0x34] sm:$0xf]
    %v1131 = vld [vmem:[%s9 + $0x38] sm:$0xf]
    %v1132 = vld [vmem:[%s9 + $0x3c] sm:$0xf]
    %v1133 = vlaneseq
    %v1134 = vshrl.u32 %v1133, 7
    %v1135 = vsub.s32 5, %v1134
    %v1136 = vrot.slane %v39, %v1135
    %v1153 = vunpack.c.l.b16 %v1117
    %v1154 = vunpack.c.l.b16 %v1118
    %v1155 = vunpack.c.l.b16 %v1119
    %v1156 = vunpack.c.l.b16 %v1120
    %v1157 = vunpack.c.l.b16 %v1121
    %v1158 = vunpack.c.l.b16 %v1122
    %v1159 = vunpack.c.l.b16 %v1123
    %v1160 = vunpack.c.l.b16 %v1124
    %v1161 = vunpack.c.l.b16 %v1125
    %v1162 = vunpack.c.l.b16 %v1126
    %v1163 = vunpack.c.l.b16 %v1127
    %v1164 = vunpack.c.l.b16 %v1128
    %v1165 = vunpack.c.l.b16 %v1129
    %v1166 = vunpack.c.l.b16 %v1130
    %v1167 = vunpack.c.l.b16 %v1131
    %v1168 = vunpack.c.l.b16 %v1132
    %v1169 = vpack.c.b16 %v1154, %v1153
    %v1170 = vpack.c.b16 %v1156, %v1155
    %v1171 = vpack.c.b16 %v1158, %v1157
    %v1172 = vpack.c.b16 %v1160, %v1159
    %v1173 = vpack.c.b16 %v1162, %v1161
    %v1174 = vpack.c.b16 %v1164, %v1163
    %v1175 = vpack.c.b16 %v1166, %v1165
    %v1176 = vpack.c.b16 %v1168, %v1167
    %1185 = vmatprep.subr.bf16.mxu0 0
    %1186 = vmatpush1.bf16.msra.mxu0 %v1176
    %1187 = vmatprep.subr.bf16.mxu0 0
    %1188 = vmatpush1.bf16.msra.mxu0 %v1175
    %1189 = vmatprep.subr.bf16.mxu0 0
    %1190 = vmatpush1.bf16.msra.mxu0 %v1174
    %1191 = vmatprep.subr.bf16.mxu0 0
    %1192 = vmatpush1.bf16.msra.mxu0 %v1173
    %1193 = vmatprep.subr.bf16.mxu0 0
    %1194 = vmatpush1.bf16.msra.mxu0 %v1172
    %1195 = vmatprep.subr.bf16.mxu0 0
    %1196 = vmatpush1.bf16.msra.mxu0 %v1171
    %1197 = vmatprep.subr.bf16.mxu0 0
    %1198 = vmatpush1.bf16.msra.mxu0 %v1170
    %1199 = vmatprep.subr.bf16.mxu0 0
    %1200 = vmatpush1.bf16.msra.mxu0 %v1169
    %1201 = vmatprep.subr.bf16.mxu0 0
    %1202 = vmatpush2.bf16.msra.mxu0 0
    %1203 = vmatprep.subr.bf16.mxu0 0
    %1204 = vmatpush2.bf16.msra.mxu0 0
    %1205 = vmatprep.subr.bf16.mxu0 0
    %1206 = vmatpush2.bf16.msra.mxu0 0
    %1207 = vmatprep.subr.bf16.mxu0 0
    %1208 = vmatpush2.bf16.msra.mxu0 0
    %1209 = vmatprep.subr.bf16.mxu0 0
    %1210 = vmatpush2.bf16.msra.mxu0 0
    %1211 = vmatprep.subr.bf16.mxu0 0
    %1212 = vmatpush2.bf16.msra.mxu0 0
    %1213 = vmatprep.subr.bf16.mxu0 0
    %1214 = vmatpush2.bf16.msra.mxu0 0
    %1215 = vmatprep.subr.bf16.mxu0 0
    %1216 = vmatpush2.bf16.msra.mxu0 0
    %1217 = vmatprep.mubr.bf16.mxu0 0
    %1218 = vmatmul.mubr.bf16.gmra.mxu0 %v1116
    %v1219 = vpop.f32.mrf.mxu0
    %v1220 = vadd.f32 %v1136, %v1219
    %v1221 = vpop.f32.mrf.mxu0
    %v1222 = vpop.f32.mrf.mxu0
    %v1223 = vpop.f32.mrf.mxu0
    %1224 = vdwg.mxu0
    %1225 = vst.msk [vmem:[#allocation2] sm:$0xff] %vm56, %v1220
    // Predicated region
    $region42: #{tpu_custom_call.1} parent=1 // pred_check
      _
    $region43: #{tpu_custom_call.1} parent=1 // pred_check_branch
      %1227 = sbr.rel (0) target = $region45
    $region44: #{tpu_custom_call.1} parent=1 // pred_region
      %s1229 = ssub.s32 128, 128
      %1230 = vsyncadd [#allocation3], %s1229
      %s1232 = sshll.u32 [#allocation2], 4
      %s1233 = int_to_ptr.vmem [resolvable:$true] %s1232
      %1235 = dma.vmem_to_hbm [thread:$0]  %s1233, 128, %s10, [#allocation3]
    $region45: #{tpu_custom_call.1} parent=1 // pred_fallthru
      _
    // Predicated region
    $region46: #{tpu_custom_call.1} parent=1 // pred_check
      _
    $region47: #{tpu_custom_call.1} parent=1 // pred_check_branch
      %1237 = sbr.rel (0) target = $region49
    $region48: #{tpu_custom_call.1} parent=1 // pred_region
      _
    $region49: #{tpu_custom_call.1} parent=1 // pred_fallthru
      _
    // Predicated region
    $region50: #{tpu_custom_call.1} parent=1 // pred_check
      _
    $region51: #{tpu_custom_call.1} parent=1 // pred_check_branch
      %1239 = sbr.rel (0) target = $region53
    $region52: #{tpu_custom_call.1} parent=1 // pred_region
      %1240 = dma.done [#allocation3], 128
    $region53: #{tpu_custom_call.1} parent=1 // pred_fallthru
      _
    // Predicated region
    $region54: #{tpu_custom_call.1} parent=1 // pred_check
      _
    $region55: #{tpu_custom_call.1} parent=1 // pred_check_branch
      %1242 = sbr.rel (0) target = $region57
    $region56: #{tpu_custom_call.1} parent=1 // pred_region
      _
    $region57: #{tpu_custom_call.1} parent=1 // pred_fallthru
      _
    %1243 = vsyncpa [#allocation3], 1

// kernel: tpu_custom_call.1
$region0: #{tpu_custom_call.1}
  #allocation0 [shape = 'u32[]', space=smem, size = 0x4, offset = 0x4, fixed_abs, tag = 'smem constant byte address 0x4 - core index']
  #allocation1 [shape = 'u32[144,128]{1,0:T(1,128)}', space=vmem, size = 0x12000, scoped, tag = 'internal scratch']
  %s0 = inlined_call_operand.vmem [shape: f32[8,1], index: 0, kind: input, shape index: {}]
  %s1 = inlined_call_operand.vmem [shape: bf16[8,8,32], index: 1, kind: input, shape index: {}]
  %s2 = inlined_call_operand.vmem [shape: f32[8,32], index: 2, kind: input, shape index: {}]
  %s3 = inlined_call_operand.vmem [shape: f32[32,4], index: 3, kind: input, shape index: {}]
  %s4 = inlined_call_operand.vmem [shape: f32[4,32], index: 4, kind: input, shape index: {}]
  %s5 = inlined_call_operand.vmem [shape: bf16[32,64], index: 5, kind: input, shape index: {}]
  %s6 = inlined_call_operand.vmem [shape: bf16[32,32], index: 6, kind: input, shape index: {}]
  %s7 = inlined_call_operand.vmem [shape: bf16[32,128], index: 7, kind: input, shape index: {}]
  %s8 = inlined_call_operand.vmem [shape: f32[1,128], index: 8, kind: input, shape index: {}]
  %s9 = inlined_call_operand.vmem [shape: bf16[128,32], index: 9, kind: input, shape index: {}]
  %s10 = inlined_call_operand.hbm [shape: f32[8,32], index: 10, kind: output, shape index: {0}]
  %s11 = inlined_call_operand.vmem [shape: f32[8,8,4], index: 11, kind: output, shape index: {1}]
  %12 = xla_tuple %s10, %s11
  %s13 = sld [smem:[#allocation0]]
  $region58: #{tpu_custom_call.1} parent=0
    _
  %s15 = ssub.s32 1, %s13
  %s16 = scalar_select 0, %s15, %s13
  $region1: #{tpu_custom_call.1} parent=0
    #allocation2 [shape = 'u8[4096]{0}', space=vmem, size = 0x1000, scoped, tag = 'output window, operand 0, single buffered']
    #allocation3 [shape = 's32[1]{0}', space=sflag, size = 0x4, scoped, tag = 'scoped memory for tpu_custom_call.1']
    %17 = vsyncpa [#allocation3], 0
    // Predicated region
    $region2: #{tpu_custom_call.1} parent=1 // pred_check
      _
    $region3: #{tpu_custom_call.1} parent=1 // pred_check_branch
      %19 = sbr.rel (0) target = $region5
    $region4: #{tpu_custom_call.1} parent=1 // pred_region
      _
    $region5: #{tpu_custom_call.1} parent=1 // pred_fallthru
      _
    // Predicated region
    $region6: #{tpu_custom_call.1} parent=1 // pred_check
      _
    $region7: #{tpu_custom_call.1} parent=1 // pred_check_branch
      %21 = sbr.rel (0) target = $region9
    $region8: #{tpu_custom_call.1} parent=1 // pred_region
      _
    $region9: #{tpu_custom_call.1} parent=1 // pred_fallthru
      _
    // Predicated region
    $region10: #{tpu_custom_call.1} parent=1 // pred_check
      _
    $region11: #{tpu_custom_call.1} parent=1 // pred_check_branch
      %23 = sbr.rel (0) target = $region13
    $region12: #{tpu_custom_call.1} parent=1 // pred_region
      _
    $region13: #{tpu_custom_call.1} parent=1 // pred_fallthru
      _
    // Predicated region
    $region14: #{tpu_custom_call.1} parent=1 // pred_check
      _
    $region15: #{tpu_custom_call.1} parent=1 // pred_check_branch
      %25 = sbr.rel (0) target = $region17
    $region16: #{tpu_custom_call.1} parent=1 // pred_region
      _
    $region17: #{tpu_custom_call.1} parent=1 // pred_fallthru
      _
    // Predicated region
    $region18: #{tpu_custom_call.1} parent=1 // pred_check
      _
    $region19: #{tpu_custom_call.1} parent=1 // pred_check_branch
      %27 = sbr.rel (0) target = $region21
    $region20: #{tpu_custom_call.1} parent=1 // pred_region
      _
    $region21: #{tpu_custom_call.1} parent=1 // pred_fallthru
      _
    // Predicated region
    $region22: #{tpu_custom_call.1} parent=1 // pred_check
      _
    $region23: #{tpu_custom_call.1} parent=1 // pred_check_branch
      %29 = sbr.rel (0) target = $region25
    $region24: #{tpu_custom_call.1} parent=1 // pred_region
      _
    $region25: #{tpu_custom_call.1} parent=1 // pred_fallthru
      _
    // Predicated region
    $region26: #{tpu_custom_call.1} parent=1 // pred_check
      _
    $region27: #{tpu_custom_call.1} parent=1 // pred_check_branch
      %31 = sbr.rel (0) target = $region29
    $region28: #{tpu_custom_call.1} parent=1 // pred_region
      _
    $region29: #{tpu_custom_call.1} parent=1 // pred_fallthru
      _
    // Predicated region
    $region30: #{tpu_custom_call.1} parent=1 // pred_check
      _
    $region31: #{tpu_custom_call.1} parent=1 // pred_check_branch
      %33 = sbr.rel (0) target = $region33
    $region32: #{tpu_custom_call.1} parent=1 // pred_region
      _
    $region33: #{tpu_custom_call.1} parent=1 // pred_fallthru
      _
    // Predicated region
    $region34: #{tpu_custom_call.1} parent=1 // pred_check
      _
    $region35: #{tpu_custom_call.1} parent=1 // pred_check_branch
      %35 = sbr.rel (0) target = $region37
    $region36: #{tpu_custom_call.1} parent=1 // pred_region
      _
    $region37: #{tpu_custom_call.1} parent=1 // pred_fallthru
      _
    // Predicated region
    $region38: #{tpu_custom_call.1} parent=1 // pred_check
      _
    $region39: #{tpu_custom_call.1} parent=1 // pred_check_branch
      %37 = sbr.rel (0) target = $region41
    $region40: #{tpu_custom_call.1} parent=1 // pred_region
      _
    $region41: #{tpu_custom_call.1} parent=1 // pred_fallthru
      _
    %v39 = vld [vmem:[%s2] sm:$0xff]
    %v40 = vld [vmem:[%s1] sm:$0xf]
    %v41 = vld [vmem:[%s1 + $0x4] sm:$0xf]
    %v42 = vld [vmem:[%s1 + $0x8] sm:$0xf]
    %v43 = vld [vmem:[%s1 + $0xc] sm:$0xf]
    %v44 = vld [vmem:[%s1 + $0x10] sm:$0xf]
    %v45 = vld [vmem:[%s1 + $0x14] sm:$0xf]
    %v46 = vld [vmem:[%s1 + $0x18] sm:$0xf]
    %v47 = vld [vmem:[%s1 + $0x1c] sm:$0xf]
    %v48 = vunpack.c.l.bf16 %v40
    %v49 = vunpack.c.l.bf16 %v41
    %v50 = vunpack.c.l.bf16 %v42
    %v51 = vunpack.c.l.bf16 %v43
    %v52 = vunpack.c.l.bf16 %v44
    %v53 = vunpack.c.l.bf16 %v45
    %v54 = vunpack.c.l.bf16 %v46
    %v55 = vunpack.c.l.bf16 %v47
    %vm56 = vcmask 261120
    %v57 = vsel %vm56, %v48, 0.0
    %58 = vadd.xlane.f32.xlu0 %v57
    %v59 = vpop.xlane.xlu0 %58
    %v60 = vsel %vm56, %v49, 0.0
    %61 = vadd.xlane.f32.xlu0 %v60
    %v62 = vpop.xlane.xlu0 %61
    %v63 = vsel %vm56, %v50, 0.0
    %64 = vadd.xlane.f32.xlu0 %v63
    %v65 = vpop.xlane.xlu0 %64
    %v66 = vsel %vm56, %v51, 0.0
    %67 = vadd.xlane.f32.xlu0 %v66
    %v68 = vpop.xlane.xlu0 %67
    %v69 = vsel %vm56, %v52, 0.0
    %70 = vadd.xlane.f32.xlu0 %v69
    %v71 = vpop.xlane.xlu0 %70
    %v72 = vsel %vm56, %v53, 0.0
    %73 = vadd.xlane.f32.xlu0 %v72
    %v74 = vpop.xlane.xlu0 %73
    %v75 = vsel %vm56, %v54, 0.0
    %76 = vadd.xlane.f32.xlu0 %v75
    %v77 = vpop.xlane.xlu0 %76
    %v78 = vsel %vm56, %v55, 0.0
    %79 = vadd.xlane.f32.xlu0 %v78
    %v80 = vpop.xlane.xlu0 %79
    %v81 = vrcp.pop 32.0
    %v82 = vmul.f32 %v59, %v81
    %v83 = vmul.f32 %v62, %v81
    %v84 = vmul.f32 %v65, %v81
    %v85 = vmul.f32 %v68, %v81
    %v86 = vmul.f32 %v71, %v81
    %v87 = vmul.f32 %v74, %v81
    %v88 = vmul.f32 %v77, %v81
    %v89 = vmul.f32 %v80, %v81
    %v90 = vsub.f32 %v48, %v82
    %v91 = vsub.f32 %v49, %v83
    %v92 = vsub.f32 %v50, %v84
    %v93 = vsub.f32 %v51, %v85
    %v94 = vsub.f32 %v52, %v86
    %v95 = vsub.f32 %v53, %v87
    %v96 = vsub.f32 %v54, %v88
    %v97 = vsub.f32 %v55, %v89
    %v98 = vmul.f32 %v90, %v90
    %v99 = vmul.f32 %v91, %v91
    %v100 = vmul.f32 %v92, %v92
    %v101 = vmul.f32 %v93, %v93
    %v102 = vmul.f32 %v94, %v94
    %v103 = vmul.f32 %v95, %v95
    %v104 = vmul.f32 %v96, %v96
    %v105 = vmul.f32 %v97, %v97
    %v106 = vsel %vm56, %v98, 0.0
    %107 = vadd.xlane.f32.xlu0 %v106
    %v108 = vpop.xlane.xlu0 %107
    %v109 = vsel %vm56, %v99, 0.0
    %110 = vadd.xlane.f32.xlu0 %v109
    %v111 = vpop.xlane.xlu0 %110
    %v112 = vsel %vm56, %v100, 0.0
    %113 = vadd.xlane.f32.xlu0 %v112
    %v114 = vpop.xlane.xlu0 %113
    %v115 = vsel %vm56, %v101, 0.0
    %116 = vadd.xlane.f32.xlu0 %v115
    %v117 = vpop.xlane.xlu0 %116
    %v118 = vsel %vm56, %v102, 0.0
    %119 = vadd.xlane.f32.xlu0 %v118
    %v120 = vpop.xlane.xlu0 %119
    %v121 = vsel %vm56, %v103, 0.0
    %122 = vadd.xlane.f32.xlu0 %v121
    %v123 = vpop.xlane.xlu0 %122
    %v124 = vsel %vm56, %v104, 0.0
    %125 = vadd.xlane.f32.xlu0 %v124
    %v126 = vpop.xlane.xlu0 %125
    %v127 = vsel %vm56, %v105, 0.0
    %128 = vadd.xlane.f32.xlu0 %v127
    %v129 = vpop.xlane.xlu0 %128
    %v130 = vmul.f32 %v108, %v81
    %v131 = vmul.f32 %v111, %v81
    %v132 = vmul.f32 %v114, %v81
    %v133 = vmul.f32 %v117, %v81
    %v134 = vmul.f32 %v120, %v81
    %v135 = vmul.f32 %v123, %v81
    %v136 = vmul.f32 %v126, %v81
    %v137 = vmul.f32 %v129, %v81
    %v138 = vadd.f32 %v130, 1e-05
    %v139 = vadd.f32 %v131, 1e-05
    %v140 = vadd.f32 %v132, 1e-05
    %v141 = vadd.f32 %v133, 1e-05
    %v142 = vadd.f32 %v134, 1e-05
    %v143 = vadd.f32 %v135, 1e-05
    %v144 = vadd.f32 %v136, 1e-05
    %v145 = vadd.f32 %v137, 1e-05
    %v146 = vrsqrt.pop %v138
    %v147 = vrsqrt.pop %v139
    %v148 = vrsqrt.pop %v140
    %v149 = vrsqrt.pop %v141
    %v150 = vrsqrt.pop %v142
    %v151 = vrsqrt.pop %v143
    %v152 = vrsqrt.pop %v144
    %v153 = vrsqrt.pop %v145
    %v154 = vmul.f32 %v90, %v146
    %v155 = vmul.f32 %v91, %v147
    %v156 = vmul.f32 %v92, %v148
    %v157 = vmul.f32 %v93, %v149
    %v158 = vmul.f32 %v94, %v150
    %v159 = vmul.f32 %v95, %v151
    %v160 = vmul.f32 %v96, %v152
    %v161 = vmul.f32 %v97, %v153
    %v162 = vpack.c.bf16 %v155, %v154
    %v163 = vpack.c.bf16 %v157, %v156
    %v164 = vpack.c.bf16 %v159, %v158
    %v165 = vpack.c.bf16 %v161, %v160
    %v166 = vld [vmem:[%s5] sm:$0xf]
    %v167 = vld [vmem:[%s5 + $0x4] sm:$0xf]
    %v168 = vld [vmem:[%s5 + $0x8] sm:$0xf]
    %v169 = vld [vmem:[%s5 + $0xc] sm:$0xf]
    %v174 = vunpack.c.l.b16 %v166
    %v175 = vunpack.c.l.b16 %v167
    %v176 = vunpack.c.l.b16 %v168
    %v177 = vunpack.c.l.b16 %v169
    %v178 = vpack.c.b16 %v175, %v174
    %v179 = vpack.c.b16 %v177, %v176
    %v183 = vsel %vm56, %v162, 0
    %v186 = vsel %vm56, %v163, 0
    %v189 = vsel %vm56, %v164, 0
    %v192 = vsel %vm56, %v165, 0
    %194 = vmatprep.subr.bf16.mxu0 0
    %195 = vmatpush1.bf16.msra.mxu0 0
    %196 = vmatprep.subr.bf16.mxu0 0
    %197 = vmatpush1.bf16.msra.mxu0 0
    %198 = vmatprep.subr.bf16.mxu0 0
    %199 = vmatpush1.bf16.msra.mxu0 0
    %200 = vmatprep.subr.bf16.mxu0 0
    %201 = vmatpush1.bf16.msra.mxu0 0
    %202 = vmatprep.subr.bf16.mxu0 0
    %203 = vmatpush1.bf16.msra.mxu0 0
    %204 = vmatprep.subr.bf16.mxu0 0
    %205 = vmatpush1.bf16.msra.mxu0 0
    %206 = vmatprep.subr.bf16.mxu0 0
    %207 = vmatpush1.bf16.msra.mxu0 %v179
    %208 = vmatprep.subr.bf16.mxu0 0
    %209 = vmatpush1.bf16.msra.mxu0 %v178
    %210 = vmatprep.subr.bf16.mxu0 0
    %211 = vmatpush2.bf16.msra.mxu0 0
    %212 = vmatprep.subr.bf16.mxu0 0
    %213 = vmatpush2.bf16.msra.mxu0 0
    %214 = vmatprep.subr.bf16.mxu0 0
    %215 = vmatpush2.bf16.msra.mxu0 0
    %216 = vmatprep.subr.bf16.mxu0 0
    %217 = vmatpush2.bf16.msra.mxu0 0
    %218 = vmatprep.subr.bf16.mxu0 0
    %219 = vmatpush2.bf16.msra.mxu0 0
    %220 = vmatprep.subr.bf16.mxu0 0
    %221 = vmatpush2.bf16.msra.mxu0 0
    %222 = vmatprep.subr.bf16.mxu0 0
    %223 = vmatpush2.bf16.msra.mxu0 0
    %224 = vmatprep.subr.bf16.mxu0 0
    %225 = vmatpush2.bf16.msra.mxu0 0
    %226 = vmatprep.mubr.bf16.mxu0 0
    %227 = vmatmul.mubr.bf16.gmra.mxu0 %v183
    %v228 = vpop.f32.mrf.mxu0
    %v229 = vadd.f32 0.0, %v228
    %v230 = vpop.f32.mrf.mxu0
    %v231 = vpop.f32.mrf.mxu0
    %v232 = vadd.f32 0.0, %v231
    %v233 = vpop.f32.mrf.mxu0
    %234 = vmatprep.mubr.bf16.mxu0 0
    %235 = vmatmul.mubr.bf16.gmra.mxu0 %v186
    %v236 = vpop.f32.mrf.mxu0
    %v237 = vadd.f32 0.0, %v236
    %v238 = vpop.f32.mrf.mxu0
    %v239 = vpop.f32.mrf.mxu0
    %v240 = vadd.f32 0.0, %v239
    %v241 = vpop.f32.mrf.mxu0
    %242 = vmatprep.mubr.bf16.mxu0 0
    %243 = vmatmul.mubr.bf16.gmra.mxu0 %v189
    %v244 = vpop.f32.mrf.mxu0
    %v245 = vadd.f32 0.0, %v244
    %v246 = vpop.f32.mrf.mxu0
    %v247 = vpop.f32.mrf.mxu0
    %v248 = vadd.f32 0.0, %v247
    %v249 = vpop.f32.mrf.mxu0
    %250 = vmatprep.mubr.bf16.mxu0 0
    %251 = vmatmul.mubr.bf16.gmra.mxu0 %v192
    %v252 = vpop.f32.mrf.mxu0
    %v253 = vadd.f32 0.0, %v252
    %v254 = vpop.f32.mrf.mxu0
    %v255 = vpop.f32.mrf.mxu0
    %v256 = vadd.f32 0.0, %v255
    %v257 = vpop.f32.mrf.mxu0
    %258 = vdwg.mxu0
    %v259 = vlaneseq
    %v260 = vshrl.u32 %v259, 7
    %v261 = vsub.s32 2, %v260
    %v262 = vrot.slane %v39, %v261
    %v263 = vadd.f32 %v229, %v262
    %v264 = vadd.f32 %v232, %v262
    %v265 = vadd.f32 %v237, %v262
    %v266 = vadd.f32 %v240, %v262
    %v267 = vadd.f32 %v245, %v262
    %v268 = vadd.f32 %v248, %v262
    %v269 = vadd.f32 %v253, %v262
    %v270 = vadd.f32 %v256, %v262
    %v271 = vlaneseq
    %v272 = vshrl.u32 %v271, 7
    %v273 = vsub.s32 3, %v272
    %v274 = vrot.slane %v39, %v273
    %276 = vrot.lane.b32.xlu0 %v274, 32
    %v277 = vpop.permute.xlu0 %276
    %v279 = vadd.f32 %v229, %v277
    %v280 = vadd.f32 %v232, %v277
    %v281 = vadd.f32 %v237, %v277
    %v282 = vadd.f32 %v240, %v277
    %v283 = vadd.f32 %v245, %v277
    %v284 = vadd.f32 %v248, %v277
    %v285 = vadd.f32 %v253, %v277
    %v286 = vadd.f32 %v256, %v277
    %v287 = vld [vmem:[%s0] sm:$0xff]
    %289 = vset.pattern.permute.xlu0 0
    %290 = vperm.xlu0 %289, %v287
    %v291 = vpop.permute.xlu0 %290
    %v293 = vlaneseq
    %v294 = vshrl.u32 %v293, 7
    %v295 = vsub.s32 0, %v294
    %v296 = vrot.slane %v39, %v295
    %v297 = vmul.f32 %v291, %v296
    %v298 = vlaneseq
    %v299 = vshrl.u32 %v298, 7
    %v300 = vsub.s32 1, %v299
    %v301 = vrot.slane %v39, %v300
    %v302 = vadd.f32 %v297, %v301
    %v304 = vcombine.high %v302, %v302
    %v306 = vunpack.c.l.s4 1966171168
    %v307 = vunpack.c.0.s8 %v306
    %v308 = vlaneseq
    %v309 = vshrl.u32 %v308, 7
    %v310 = vsub.s32 %v307, %v309
    %v311 = vrot.slane %v302, %v310
    %v313 = vunpack.c.l.s4 1966171168
    %v314 = vunpack.c.0.s8 %v313
    %v315 = vlaneseq
    %v316 = vshrl.u32 %v315, 7
    %v317 = vsub.s32 %v314, %v316
    %v318 = vrot.slane %v304, %v317
    %v319 = vcombine.high %v311, %v311
    %v320 = vcombine.high %v318, %v318
    %v322 = vunpack.c.l.s4 1966171168
    %v323 = vunpack.c.0.s8 %v322
    %v324 = vlaneseq
    %v325 = vshrl.u32 %v324, 7
    %v326 = vsub.s32 %v323, %v325
    %v327 = vrot.slane %v311, %v326
    %v329 = vunpack.c.l.s4 1966171168
    %v330 = vunpack.c.0.s8 %v329
    %v331 = vlaneseq
    %v332 = vshrl.u32 %v331, 7
    %v333 = vsub.s32 %v330, %v332
    %v334 = vrot.slane %v318, %v333
    %v336 = vunpack.c.l.s4 1966171168
    %v337 = vunpack.c.0.s8 %v336
    %v338 = vlaneseq
    %v339 = vshrl.u32 %v338, 7
    %v340 = vsub.s32 %v337, %v339
    %v341 = vrot.slane %v319, %v340
    %v343 = vunpack.c.l.s4 1966171168
    %v344 = vunpack.c.0.s8 %v343
    %v345 = vlaneseq
    %v346 = vshrl.u32 %v345, 7
    %v347 = vsub.s32 %v344, %v346
    %v348 = vrot.slane %v320, %v347
    %v349 = vcombine.high %v327, %v327
    %v350 = vcombine.high %v334, %v334
    %v351 = vcombine.high %v341, %v341
    %v352 = vcombine.high %v348, %v348
    %v353 = vlaneseq
    %v354 = vshrl.u32 %v353, 7
    %v355 = vsub.s32 0, %v354
    %v356 = vrot.slane %v327, %v355
    %v357 = vlaneseq
    %v358 = vshrl.u32 %v357, 7
    %v359 = vsub.s32 0, %v358
    %v360 = vrot.slane %v341, %v359
    %v361 = vlaneseq
    %v362 = vshrl.u32 %v361, 7
    %v363 = vsub.s32 0, %v362
    %v364 = vrot.slane %v349, %v363
    %v365 = vlaneseq
    %v366 = vshrl.u32 %v365, 7
    %v367 = vsub.s32 0, %v366
    %v368 = vrot.slane %v351, %v367
    %v369 = vlaneseq
    %v370 = vshrl.u32 %v369, 7
    %v371 = vsub.s32 0, %v370
    %v372 = vrot.slane %v334, %v371
    %v373 = vlaneseq
    %v374 = vshrl.u32 %v373, 7
    %v375 = vsub.s32 0, %v374
    %v376 = vrot.slane %v348, %v375
    %v377 = vlaneseq
    %v378 = vshrl.u32 %v377, 7
    %v379 = vsub.s32 0, %v378
    %v380 = vrot.slane %v350, %v379
    %v381 = vlaneseq
    %v382 = vshrl.u32 %v381, 7
    %v383 = vsub.s32 0, %v382
    %v384 = vrot.slane %v352, %v383
    %v393 = vmul.f32 %v356, %v263
    %v394 = vmul.f32 %v360, %v264
    %v395 = vmul.f32 %v364, %v265
    %v396 = vmul.f32 %v368, %v266
    %v397 = vmul.f32 %v372, %v267
    %v398 = vmul.f32 %v376, %v268
    %v399 = vmul.f32 %v380, %v269
    %v400 = vmul.f32 %v384, %v270
    %v401 = vld [vmem:[%s3] sm:$0xff]
    %v402 = vld [vmem:[%s3 + $0x8] sm:$0xff]
    %v403 = vld [vmem:[%s3 + $0x10] sm:$0xff]
    %v404 = vld [vmem:[%s3 + $0x18] sm:$0xff]
    %v406 = vsel %vm56, %v393, 0
    %v409 = vsel %vm56, %v394, 0
    %v412 = vsel %vm56, %v395, 0
    %v415 = vsel %vm56, %v396, 0
    %v418 = vsel %vm56, %v397, 0
    %v421 = vsel %vm56, %v398, 0
    %v424 = vsel %vm56, %v399, 0
    %v427 = vsel %vm56, %v400, 0
    %429 = vmatprep.subr.mxu0 0.0
    %430 = vmatpush1.msra.mxu0 0.0
    %431 = vmatprep.subr.mxu0 0.0
    %432 = vmatpush1.msra.mxu0 0.0
    %433 = vmatprep.subr.mxu0 0.0
    %434 = vmatpush1.msra.mxu0 0.0
    %435 = vmatprep.subr.mxu0 0.0
    %436 = vmatpush1.msra.mxu0 0.0
    %437 = vmatprep.subr.mxu0 0.0
    %438 = vmatpush1.msra.mxu0 0.0
    %439 = vmatprep.subr.mxu0 0.0
    %440 = vmatpush1.msra.mxu0 0.0
    %441 = vmatprep.subr.mxu0 0.0
    %442 = vmatpush1.msra.mxu0 0.0
    %443 = vmatprep.subr.mxu0 0.0
    %444 = vmatpush1.msra.mxu0 0.0
    %445 = vmatprep.subr.mxu0 0.0
    %446 = vmatpush1.msra.mxu0 0.0
    %447 = vmatprep.subr.mxu0 0.0
    %448 = vmatpush1.msra.mxu0 0.0
    %449 = vmatprep.subr.mxu0 0.0
    %450 = vmatpush1.msra.mxu0 0.0
    %451 = vmatprep.subr.mxu0 0.0
    %452 = vmatpush1.msra.mxu0 0.0
    %453 = vmatprep.subr.mxu0 0.0
    %454 = vmatpush1.msra.mxu0 %v404
    %455 = vmatprep.subr.mxu0 0.0
    %456 = vmatpush1.msra.mxu0 %v403
    %457 = vmatprep.subr.mxu0 0.0
    %458 = vmatpush1.msra.mxu0 %v402
    %459 = vmatprep.subr.mxu0 0.0
    %460 = vmatpush1.msra.mxu0 %v401
    %461 = vmatprep.subr.mxu0 0.0
    %462 = vmatpush2.msra.mxu0 0.0
    %463 = vmatprep.subr.mxu0 0.0
    %464 = vmatpush2.msra.mxu0 0.0
    %465 = vmatprep.subr.mxu0 0.0
    %466 = vmatpush2.msra.mxu0 0.0
    %467 = vmatprep.subr.mxu0 0.0
    %468 = vmatpush2.msra.mxu0 0.0
    %469 = vmatprep.subr.mxu0 0.0
    %470 = vmatpush2.msra.mxu0 0.0
    %471 = vmatprep.subr.mxu0 0.0
    %472 = vmatpush2.msra.mxu0 0.0
    %473 = vmatprep.subr.mxu0 0.0
    %474 = vmatpush2.msra.mxu0 0.0
    %475 = vmatprep.subr.mxu0 0.0
    %476 = vmatpush2.msra.mxu0 0.0
    %477 = vmatprep.subr.mxu0 0.0
    %478 = vmatpush2.msra.mxu0 0.0
    %479 = vmatprep.subr.mxu0 0.0
    %480 = vmatpush2.msra.mxu0 0.0
    %481 = vmatprep.subr.mxu0 0.0
    %482 = vmatpush2.msra.mxu0 0.0
    %483 = vmatprep.subr.mxu0 0.0
    %484 = vmatpush2.msra.mxu0 0.0
    %485 = vmatprep.subr.mxu0 0.0
    %486 = vmatpush2.msra.mxu0 0.0
    %487 = vmatprep.subr.mxu0 0.0
    %488 = vmatpush2.msra.mxu0 0.0
    %489 = vmatprep.subr.mxu0 0.0
    %490 = vmatpush2.msra.mxu0 0.0
    %491 = vmatprep.subr.mxu0 0.0
    %492 = vmatpush2.msra.mxu0 0.0
    %493 = vmatprep.mubr.f32.mxu0 0.0
    %494 = vmatmul.mubr.f32.gmra.mxu0 %v406
    %v495 = vpop.f32.mrf.mxu0
    %v496 = vadd.f32 0.0, %v495
    %v497 = vpop.f32.mrf.mxu0
    %498 = vmatprep.mubr.f32.mxu0 0.0
    %499 = vmatmul.mubr.f32.gmra.mxu0 %v409
    %v500 = vpop.f32.mrf.mxu0
    %v501 = vadd.f32 0.0, %v500
    %v502 = vpop.f32.mrf.mxu0
    %503 = vmatprep.mubr.f32.mxu0 0.0
    %504 = vmatmul.mubr.f32.gmra.mxu0 %v412
    %v505 = vpop.f32.mrf.mxu0
    %v506 = vadd.f32 0.0, %v505
    %v507 = vpop.f32.mrf.mxu0
    %508 = vmatprep.mubr.f32.mxu0 0.0
    %509 = vmatmul.mubr.f32.gmra.mxu0 %v415
    %v510 = vpop.f32.mrf.mxu0
    %v511 = vadd.f32 0.0, %v510
    %v512 = vpop.f32.mrf.mxu0
    %513 = vmatprep.mubr.f32.mxu0 0.0
    %514 = vmatmul.mubr.f32.gmra.mxu0 %v418
    %v515 = vpop.f32.mrf.mxu0
    %v516 = vadd.f32 0.0, %v515
    %v517 = vpop.f32.mrf.mxu0
    %518 = vmatprep.mubr.f32.mxu0 0.0
    %519 = vmatmul.mubr.f32.gmra.mxu0 %v421
    %v520 = vpop.f32.mrf.mxu0
    %v521 = vadd.f32 0.0, %v520
    %v522 = vpop.f32.mrf.mxu0
    %523 = vmatprep.mubr.f32.mxu0 0.0
    %524 = vmatmul.mubr.f32.gmra.mxu0 %v424
    %v525 = vpop.f32.mrf.mxu0
    %v526 = vadd.f32 0.0, %v525
    %v527 = vpop.f32.mrf.mxu0
    %528 = vmatprep.mubr.f32.mxu0 0.0
    %529 = vmatmul.mubr.f32.gmra.mxu0 %v427
    %v530 = vpop.f32.mrf.mxu0
    %v531 = vadd.f32 0.0, %v530
    %v532 = vpop.f32.mrf.mxu0
    %533 = vdwg.mxu0
    %vm534 = vcmask 31744
    %v535 = vsel %vm534, %v496, -inf
    %v536 = vrot.slane %v535, 4
    %v537 = vmax.f32 %v535, %v536
    %v538 = vrot.slane %v537, 2
    %v539 = vmax.f32 %v537, %v538
    %v540 = vrot.slane %v539, 1
    %v541 = vmax.f32 %v539, %v540
    %v542 = vsel %vm534, %v501, -inf
    %v543 = vrot.slane %v542, 4
    %v544 = vmax.f32 %v542, %v543
    %v545 = vrot.slane %v544, 2
    %v546 = vmax.f32 %v544, %v545
    %v547 = vrot.slane %v546, 1
    %v548 = vmax.f32 %v546, %v547
    %v549 = vsel %vm534, %v506, -inf
    %v550 = vrot.slane %v549, 4
    %v551 = vmax.f32 %v549, %v550
    %v552 = vrot.slane %v551, 2
    %v553 = vmax.f32 %v551, %v552
    %v554 = vrot.slane %v553, 1
    %v555 = vmax.f32 %v553, %v554
    %v556 = vsel %vm534, %v511, -inf
    %v557 = vrot.slane %v556, 4
    %v558 = vmax.f32 %v556, %v557
    %v559 = vrot.slane %v558, 2
    %v560 = vmax.f32 %v558, %v559
    %v561 = vrot.slane %v560, 1
    %v562 = vmax.f32 %v560, %v561
    %v563 = vsel %vm534, %v516, -inf
    %v564 = vrot.slane %v563, 4
    %v565 = vmax.f32 %v563, %v564
    %v566 = vrot.slane %v565, 2
    %v567 = vmax.f32 %v565, %v566
    %v568 = vrot.slane %v567, 1
    %v569 = vmax.f32 %v567, %v568
    %v570 = vsel %vm534, %v521, -inf
    %v571 = vrot.slane %v570, 4
    %v572 = vmax.f32 %v570, %v571
    %v573 = vrot.slane %v572, 2
    %v574 = vmax.f32 %v572, %v573
    %v575 = vrot.slane %v574, 1
    %v576 = vmax.f32 %v574, %v575
    %v577 = vsel %vm534, %v526, -inf
    %v578 = vrot.slane %v577, 4
    %v579 = vmax.f32 %v577, %v578
    %v580 = vrot.slane %v579, 2
    %v581 = vmax.f32 %v579, %v580
    %v582 = vrot.slane %v581, 1
    %v583 = vmax.f32 %v581, %v582
    %v584 = vsel %vm534, %v531, -inf
    %v585 = vrot.slane %v584, 4
    %v586 = vmax.f32 %v584, %v585
    %v587 = vrot.slane %v586, 2
    %v588 = vmax.f32 %v586, %v587
    %v589 = vrot.slane %v588, 1
    %v590 = vmax.f32 %v588, %v589
    %v591 = vsub.f32 %v496, %v541
    %v592 = vsub.f32 %v501, %v548
    %v593 = vsub.f32 %v506, %v555
    %v594 = vsub.f32 %v511, %v562
    %v595 = vsub.f32 %v516, %v569
    %v596 = vsub.f32 %v521, %v576
    %v597 = vsub.f32 %v526, %v583
    %v598 = vsub.f32 %v531, %v590
    %v599 = vmul.f32 %v591, 1.442695
    %v600 = vpow.pop %v599
    %v601 = vmul.f32 %v592, 1.442695
    %v602 = vpow.pop %v601
    %v603 = vmul.f32 %v593, 1.442695
    %v604 = vpow.pop %v603
    %v605 = vmul.f32 %v594, 1.442695
    %v606 = vpow.pop %v605
    %v607 = vmul.f32 %v595, 1.442695
    %v608 = vpow.pop %v607
    %v609 = vmul.f32 %v596, 1.442695
    %v610 = vpow.pop %v609
    %v611 = vmul.f32 %v597, 1.442695
    %v612 = vpow.pop %v611
    %v613 = vmul.f32 %v598, 1.442695
    %v614 = vpow.pop %v613
    %v615 = vsel %vm534, %v600, 0.0
    %v616 = vrot.slane %v615, 4
    %v617 = vadd.f32 %v615, %v616
    %v618 = vrot.slane %v617, 2
    %v619 = vadd.f32 %v617, %v618
    %v620 = vrot.slane %v619, 1
    %v621 = vadd.f32 %v619, %v620
    %v622 = vsel %vm534, %v602, 0.0
    %v623 = vrot.slane %v622, 4
    %v624 = vadd.f32 %v622, %v623
    %v625 = vrot.slane %v624, 2
    %v626 = vadd.f32 %v624, %v625
    %v627 = vrot.slane %v626, 1
    %v628 = vadd.f32 %v626, %v627
    %v629 = vsel %vm534, %v604, 0.0
    %v630 = vrot.slane %v629, 4
    %v631 = vadd.f32 %v629, %v630
    %v632 = vrot.slane %v631, 2
    %v633 = vadd.f32 %v631, %v632
    %v634 = vrot.slane %v633, 1
    %v635 = vadd.f32 %v633, %v634
    %v636 = vsel %vm534, %v606, 0.0
    %v637 = vrot.slane %v636, 4
    %v638 = vadd.f32 %v636, %v637
    %v639 = vrot.slane %v638, 2
    %v640 = vadd.f32 %v638, %v639
    %v641 = vrot.slane %v640, 1
    %v642 = vadd.f32 %v640, %v641
    %v643 = vsel %vm534, %v608, 0.0
    %v644 = vrot.slane %v643, 4
    %v645 = vadd.f32 %v643, %v644
    %v646 = vrot.slane %v645, 2
    %v647 = vadd.f32 %v645, %v646
    %v648 = vrot.slane %v647, 1
    %v649 = vadd.f32 %v647, %v648
    %v650 = vsel %vm534, %v610, 0.0
    %v651 = vrot.slane %v650, 4
    %v652 = vadd.f32 %v650, %v651
    %v653 = vrot.slane %v652, 2
    %v654 = vadd.f32 %v652, %v653
    %v655 = vrot.slane %v654, 1
    %v656 = vadd.f32 %v654, %v655
    %v657 = vsel %vm534, %v612, 0.0
    %v658 = vrot.slane %v657, 4
    %v659 = vadd.f32 %v657, %v658
    %v660 = vrot.slane %v659, 2
    %v661 = vadd.f32 %v659, %v660
    %v662 = vrot.slane %v661, 1
    %v663 = vadd.f32 %v661, %v662
    %v664 = vsel %vm534, %v614, 0.0
    %v665 = vrot.slane %v664, 4
    %v666 = vadd.f32 %v664, %v665
    %v667 = vrot.slane %v666, 2
    %v668 = vadd.f32 %v666, %v667
    %v669 = vrot.slane %v668, 1
    %v670 = vadd.f32 %v668, %v669
    %v671 = vrcp.pop %v621
    %v672 = vmul.f32 1.0, %v671
    %v673 = vrcp.pop %v628
    %v674 = vmul.f32 1.0, %v673
    %v675 = vrcp.pop %v635
    %v676 = vmul.f32 1.0, %v675
    %v677 = vrcp.pop %v642
    %v678 = vmul.f32 1.0, %v677
    %v679 = vrcp.pop %v649
    %v680 = vmul.f32 1.0, %v679
    %v681 = vrcp.pop %v656
    %v682 = vmul.f32 1.0, %v681
    %v683 = vrcp.pop %v663
    %v684 = vmul.f32 1.0, %v683
    %v685 = vrcp.pop %v670
    %v686 = vmul.f32 1.0, %v685
    %v687 = vmul.f32 %v600, %v672
    %v688 = vmul.f32 %v602, %v674
    %v689 = vmul.f32 %v604, %v676
    %v690 = vmul.f32 %v606, %v678
    %v691 = vmul.f32 %v608, %v680
    %v692 = vmul.f32 %v610, %v682
    %v693 = vmul.f32 %v612, %v684
    %v694 = vmul.f32 %v614, %v686
    %695 = vst.msk [vmem:[%s11] sm:$0xff] %vm534, %v687
    %696 = vst.msk [vmem:[%s11 + $0x8] sm:$0xff] %vm534, %v688
    %697 = vst.msk [vmem:[%s11 + $0x10] sm:$0xff] %vm534, %v689
    %698 = vst.msk [vmem:[%s11 + $0x18] sm:$0xff] %vm534, %v690
    %699 = vst.msk [vmem:[%s11 + $0x20] sm:$0xff] %vm534, %v691
    %700 = vst.msk [vmem:[%s11 + $0x28] sm:$0xff] %vm534, %v692
    %701 = vst.msk [vmem:[%s11 + $0x30] sm:$0xff] %vm534, %v693
    %702 = vst.msk [vmem:[%s11 + $0x38] sm:$0xff] %vm534, %v694
    %v703 = vld [vmem:[%s4] sm:$0xf]
    %v705 = vsel %vm534, %v687, 0
    %v708 = vsel %vm534, %v688, 0
    %v711 = vsel %vm534, %v689, 0
    %v714 = vsel %vm534, %v690, 0
    %v717 = vsel %vm534, %v691, 0
    %v720 = vsel %vm534, %v692, 0
    %v723 = vsel %vm534, %v693, 0
    %v726 = vsel %vm534, %v694, 0
    %vm728 = vcmask 1043456
    %v730 = vsel %vm728, %v703, 0
    %732 = vmatprep.subr.mxu0 0.0
    %733 = vmatpush1.msra.mxu0 0.0
    %734 = vmatprep.subr.mxu0 0.0
    %735 = vmatpush1.msra.mxu0 0.0
    %736 = vmatprep.subr.mxu0 0.0
    %737 = vmatpush1.msra.mxu0 0.0
    %738 = vmatprep.subr.mxu0 0.0
    %739 = vmatpush1.msra.mxu0 0.0
    %740 = vmatprep.subr.mxu0 0.0
    %741 = vmatpush1.msra.mxu0 0.0
    %742 = vmatprep.subr.mxu0 0.0
    %743 = vmatpush1.msra.mxu0 0.0
    %744 = vmatprep.subr.mxu0 0.0
    %745 = vmatpush1.msra.mxu0 0.0
    %746 = vmatprep.subr.mxu0 0.0
    %747 = vmatpush1.msra.mxu0 0.0
    %748 = vmatprep.subr.mxu0 0.0
    %749 = vmatpush1.msra.mxu0 0.0
    %750 = vmatprep.subr.mxu0 0.0
    %751 = vmatpush1.msra.mxu0 0.0
    %752 = vmatprep.subr.mxu0 0.0
    %753 = vmatpush1.msra.mxu0 0.0
    %754 = vmatprep.subr.mxu0 0.0
    %755 = vmatpush1.msra.mxu0 0.0
    %756 = vmatprep.subr.mxu0 0.0
    %757 = vmatpush1.msra.mxu0 0.0
    %758 = vmatprep.subr.mxu0 0.0
    %759 = vmatpush1.msra.mxu0 0.0
    %760 = vmatprep.subr.mxu0 0.0
    %761 = vmatpush1.msra.mxu0 0.0
    %762 = vmatprep.subr.mxu0 0.0
    %763 = vmatpush1.msra.mxu0 %v730
    %764 = vmatprep.subr.mxu0 0.0
    %765 = vmatpush2.msra.mxu0 0.0
    %766 = vmatprep.subr.mxu0 0.0
    %767 = vmatpush2.msra.mxu0 0.0
    %768 = vmatprep.subr.mxu0 0.0
    %769 = vmatpush2.msra.mxu0 0.0
    %770 = vmatprep.subr.mxu0 0.0
    %771 = vmatpush2.msra.mxu0 0.0
    %772 = vmatprep.subr.mxu0 0.0
    %773 = vmatpush2.msra.mxu0 0.0
    %774 = vmatprep.subr.mxu0 0.0
    %775 = vmatpush2.msra.mxu0 0.0
    %776 = vmatprep.subr.mxu0 0.0
    %777 = vmatpush2.msra.mxu0 0.0
    %778 = vmatprep.subr.mxu0 0.0
    %779 = vmatpush2.msra.mxu0 0.0
    %780 = vmatprep.subr.mxu0 0.0
    %781 = vmatpush2.msra.mxu0 0.0
    %782 = vmatprep.subr.mxu0 0.0
    %783 = vmatpush2.msra.mxu0 0.0
    %784 = vmatprep.subr.mxu0 0.0
    %785 = vmatpush2.msra.mxu0 0.0
    %786 = vmatprep.subr.mxu0 0.0
    %787 = vmatpush2.msra.mxu0 0.0
    %788 = vmatprep.subr.mxu0 0.0
    %789 = vmatpush2.msra.mxu0 0.0
    %790 = vmatprep.subr.mxu0 0.0
    %791 = vmatpush2.msra.mxu0 0.0
    %792 = vmatprep.subr.mxu0 0.0
    %793 = vmatpush2.msra.mxu0 0.0
    %794 = vmatprep.subr.mxu0 0.0
    %795 = vmatpush2.msra.mxu0 0.0
    %796 = vmatprep.mubr.f32.mxu0 0.0
    %797 = vmatmul.mubr.f32.gmra.mxu0 %v705
    %v798 = vpop.f32.mrf.mxu0
    %v799 = vadd.f32 0.0, %v798
    %v800 = vpop.f32.mrf.mxu0
    %801 = vmatprep.mubr.f32.mxu0 0.0
    %802 = vmatmul.mubr.f32.gmra.mxu0 %v708
    %v803 = vpop.f32.mrf.mxu0
    %v804 = vadd.f32 0.0, %v803
    %v805 = vpop.f32.mrf.mxu0
    %806 = vmatprep.mubr.f32.mxu0 0.0
    %807 = vmatmul.mubr.f32.gmra.mxu0 %v711
    %v808 = vpop.f32.mrf.mxu0
    %v809 = vadd.f32 0.0, %v808
    %v810 = vpop.f32.mrf.mxu0
    %811 = vmatprep.mubr.f32.mxu0 0.0
    %812 = vmatmul.mubr.f32.gmra.mxu0 %v714
    %v813 = vpop.f32.mrf.mxu0
    %v814 = vadd.f32 0.0, %v813
    %v815 = vpop.f32.mrf.mxu0
    %816 = vmatprep.mubr.f32.mxu0 0.0
    %817 = vmatmul.mubr.f32.gmra.mxu0 %v717
    %v818 = vpop.f32.mrf.mxu0
    %v819 = vadd.f32 0.0, %v818
    %v820 = vpop.f32.mrf.mxu0
    %821 = vmatprep.mubr.f32.mxu0 0.0
    %822 = vmatmul.mubr.f32.gmra.mxu0 %v720
    %v823 = vpop.f32.mrf.mxu0
    %v824 = vadd.f32 0.0, %v823
    %v825 = vpop.f32.mrf.mxu0
    %826 = vmatprep.mubr.f32.mxu0 0.0
    %827 = vmatmul.mubr.f32.gmra.mxu0 %v723
    %v828 = vpop.f32.mrf.mxu0
    %v829 = vadd.f32 0.0, %v828
    %v830 = vpop.f32.mrf.mxu0
    %831 = vmatprep.mubr.f32.mxu0 0.0
    %832 = vmatmul.mubr.f32.gmra.mxu0 %v726
    %v833 = vpop.f32.mrf.mxu0
    %v834 = vadd.f32 0.0, %v833
    %v835 = vpop.f32.mrf.mxu0
    %836 = vdwg.mxu0
    %845 = vrot.lane.b32.xlu0 %v279, 96
    %v846 = vpop.permute.xlu0 %845
    %847 = vrot.lane.b32.xlu0 %v280, 96
    %v848 = vpop.permute.xlu0 %847
    %849 = vrot.lane.b32.xlu0 %v281, 96
    %v850 = vpop.permute.xlu0 %849
    %851 = vrot.lane.b32.xlu0 %v282, 96
    %v852 = vpop.permute.xlu0 %851
    %853 = vrot.lane.b32.xlu0 %v283, 96
    %v854 = vpop.permute.xlu0 %853
    %855 = vrot.lane.b32.xlu0 %v284, 96
    %v856 = vpop.permute.xlu0 %855
    %857 = vrot.lane.b32.xlu0 %v285, 96
    %v858 = vpop.permute.xlu0 %857
    %859 = vrot.lane.b32.xlu0 %v286, 96
    %v860 = vpop.permute.xlu0 %859
    %v869 = vmul.f32 %v799, %v846
    %v870 = vmul.f32 %v804, %v848
    %v871 = vmul.f32 %v809, %v850
    %v872 = vmul.f32 %v814, %v852
    %v873 = vmul.f32 %v819, %v854
    %v874 = vmul.f32 %v824, %v856
    %v875 = vmul.f32 %v829, %v858
    %v876 = vmul.f32 %v834, %v860
    %v877 = vsel %vm56, %v869, 0.0
    %v878 = vrot.slane %v877, 4
    %v879 = vadd.f32 %v877, %v878
    %v880 = vrot.slane %v879, 2
    %v881 = vadd.f32 %v879, %v880
    %v882 = vrot.slane %v881, 1
    %v883 = vadd.f32 %v881, %v882
    %v884 = vsel %vm56, %v870, 0.0
    %v885 = vrot.slane %v884, 4
    %v886 = vadd.f32 %v884, %v885
    %v887 = vrot.slane %v886, 2
    %v888 = vadd.f32 %v886, %v887
    %v889 = vrot.slane %v888, 1
    %v890 = vadd.f32 %v888, %v889
    %v891 = vsel %vm56, %v871, 0.0
    %v892 = vrot.slane %v891, 4
    %v893 = vadd.f32 %v891, %v892
    %v894 = vrot.slane %v893, 2
    %v895 = vadd.f32 %v893, %v894
    %v896 = vrot.slane %v895, 1
    %v897 = vadd.f32 %v895, %v896
    %v898 = vsel %vm56, %v872, 0.0
    %v899 = vrot.slane %v898, 4
    %v900 = vadd.f32 %v898, %v899
    %v901 = vrot.slane %v900, 2
    %v902 = vadd.f32 %v900, %v901
    %v903 = vrot.slane %v902, 1
    %v904 = vadd.f32 %v902, %v903
    %v905 = vsel %vm56, %v873, 0.0
    %v906 = vrot.slane %v905, 4
    %v907 = vadd.f32 %v905, %v906
    %v908 = vrot.slane %v907, 2
    %v909 = vadd.f32 %v907, %v908
    %v910 = vrot.slane %v909, 1
    %v911 = vadd.f32 %v909, %v910
    %v912 = vsel %vm56, %v874, 0.0
    %v913 = vrot.slane %v912, 4
    %v914 = vadd.f32 %v912, %v913
    %v915 = vrot.slane %v914, 2
    %v916 = vadd.f32 %v914, %v915
    %v917 = vrot.slane %v916, 1
    %v918 = vadd.f32 %v916, %v917
    %v919 = vsel %vm56, %v875, 0.0
    %v920 = vrot.slane %v919, 4
    %v921 = vadd.f32 %v919, %v920
    %v922 = vrot.slane %v921, 2
    %v923 = vadd.f32 %v921, %v922
    %v924 = vrot.slane %v923, 1
    %v925 = vadd.f32 %v923, %v924
    %v926 = vsel %vm56, %v876, 0.0
    %v927 = vrot.slane %v926, 4
    %v928 = vadd.f32 %v926, %v927
    %v929 = vrot.slane %v928, 2
    %v930 = vadd.f32 %v928, %v929
    %v931 = vrot.slane %v930, 1
    %v932 = vadd.f32 %v930, %v931
    %v933 = vpack.c.bf16 %v883, %v883
    %v934 = vpack.c.bf16 %v890, %v890
    %v935 = vpack.c.bf16 %v897, %v897
    %v936 = vpack.c.bf16 %v904, %v904
    %v937 = vpack.c.bf16 %v911, %v911
    %v938 = vpack.c.bf16 %v918, %v918
    %v939 = vpack.c.bf16 %v925, %v925
    %v940 = vpack.c.bf16 %v932, %v932
    %v941 = vld [vmem:[%s6] sm:$0xf]
    %v942 = vld [vmem:[%s6 + $0x4] sm:$0xf]
    %v943 = vld [vmem:[%s6 + $0x8] sm:$0xf]
    %v944 = vld [vmem:[%s6 + $0xc] sm:$0xf]
    %v945 = vlaneseq
    %v946 = vshrl.u32 %v945, 7
    %v947 = vsub.s32 4, %v946
    %v948 = vrot.slane %v39, %v947
    %v957 = vunpack.c.l.b16 %v933
    %v958 = vunpack.c.l.b16 %v934
    %v959 = vunpack.c.l.b16 %v935
    %v960 = vunpack.c.l.b16 %v936
    %v961 = vunpack.c.l.b16 %v937
    %v962 = vunpack.c.l.b16 %v938
    %v963 = vunpack.c.l.b16 %v939
    %v964 = vunpack.c.l.b16 %v940
    %vm965 = vcmask 1041409
    %v966 = vsel %vm965, %v958, %v957
    %vm967 = vcmask 1042434
    %v968 = vsel %vm967, %v959, %v966
    %vm969 = vcmask 1043459
    %v970 = vsel %vm969, %v960, %v968
    %vm971 = vcmask 1044484
    %v972 = vsel %vm971, %v961, %v970
    %vm973 = vcmask 1045509
    %v974 = vsel %vm973, %v962, %v972
    %vm975 = vcmask 1046534
    %v976 = vsel %vm975, %v963, %v974
    %vm977 = vcmask 1047559
    %v978 = vsel %vm977, %v964, %v976
    %v979 = vpack.c.b16 %v978, %v978
    %v984 = vunpack.c.l.b16 %v941
    %v985 = vunpack.c.l.b16 %v942
    %v986 = vunpack.c.l.b16 %v943
    %v987 = vunpack.c.l.b16 %v944
    %v988 = vpack.c.b16 %v985, %v984
    %v989 = vpack.c.b16 %v987, %v986
    %v993 = vsel %vm56, %v979, 0
    %995 = vmatprep.subr.bf16.mxu0 0
    %996 = vmatpush1.bf16.msra.mxu0 0
    %997 = vmatprep.subr.bf16.mxu0 0
    %998 = vmatpush1.bf16.msra.mxu0 0
    %999 = vmatprep.subr.bf16.mxu0 0
    %1000 = vmatpush1.bf16.msra.mxu0 0
    %1001 = vmatprep.subr.bf16.mxu0 0
    %1002 = vmatpush1.bf16.msra.mxu0 0
    %1003 = vmatprep.subr.bf16.mxu0 0
    %1004 = vmatpush1.bf16.msra.mxu0 0
    %1005 = vmatprep.subr.bf16.mxu0 0
    %1006 = vmatpush1.bf16.msra.mxu0 0
    %1007 = vmatprep.subr.bf16.mxu0 0
    %1008 = vmatpush1.bf16.msra.mxu0 %v989
    %1009 = vmatprep.subr.bf16.mxu0 0
    %1010 = vmatpush1.bf16.msra.mxu0 %v988
    %1011 = vmatprep.subr.bf16.mxu0 0
    %1012 = vmatpush2.bf16.msra.mxu0 0
    %1013 = vmatprep.subr.bf16.mxu0 0
    %1014 = vmatpush2.bf16.msra.mxu0 0
    %1015 = vmatprep.subr.bf16.mxu0 0
    %1016 = vmatpush2.bf16.msra.mxu0 0
    %1017 = vmatprep.subr.bf16.mxu0 0
    %1018 = vmatpush2.bf16.msra.mxu0 0
    %1019 = vmatprep.subr.bf16.mxu0 0
    %1020 = vmatpush2.bf16.msra.mxu0 0
    %1021 = vmatprep.subr.bf16.mxu0 0
    %1022 = vmatpush2.bf16.msra.mxu0 0
    %1023 = vmatprep.subr.bf16.mxu0 0
    %1024 = vmatpush2.bf16.msra.mxu0 0
    %1025 = vmatprep.subr.bf16.mxu0 0
    %1026 = vmatpush2.bf16.msra.mxu0 0
    %1027 = vmatprep.mubr.bf16.mxu0 0
    %1028 = vmatmul.mubr.bf16.gmra.mxu0 %v993
    %v1029 = vpop.f32.mrf.mxu0
    %v1030 = vadd.f32 %v948, %v1029
    %v1031 = vpop.f32.mrf.mxu0
    %v1032 = vpop.f32.mrf.mxu0
    %v1033 = vpop.f32.mrf.mxu0
    %1034 = vdwg.mxu0
    %v1035 = vsel %vm56, %v1030, 0.0
    %1036 = vadd.xlane.f32.xlu0 %v1035
    %v1037 = vpop.xlane.xlu0 %1036
    %v1038 = vmul.f32 %v1037, %v81
    %v1039 = vsub.f32 %v1030, %v1038
    %v1040 = vmul.f32 %v1039, %v1039
    %v1041 = vsel %vm56, %v1040, 0.0
    %1042 = vadd.xlane.f32.xlu0 %v1041
    %v1043 = vpop.xlane.xlu0 %1042
    %v1044 = vmul.f32 %v1043, %v81
    %v1045 = vadd.f32 %v1044, 1e-05
    %v1046 = vrsqrt.pop %v1045
    %v1047 = vmul.f32 %v1039, %v1046
    %v1048 = vpack.c.bf16 %v1047, %v1047
    %v1049 = vld [vmem:[%s7] sm:$0xf]
    %v1050 = vld [vmem:[%s7 + $0x4] sm:$0xf]
    %v1051 = vld [vmem:[%s7 + $0x8] sm:$0xf]
    %v1052 = vld [vmem:[%s7 + $0xc] sm:$0xf]
    %v1053 = vld [vmem:[%s8] sm:$0x1]
    %v1055 = vlaneseq
    %v1056 = vshrl.u32 %v1055, 7
    %v1057 = vsub.s32 0, %v1056
    %v1058 = vrot.slane %v1053, %v1057
    %v1064 = vunpack.c.l.b16 %v1049
    %v1065 = vunpack.c.l.b16 %v1050
    %v1066 = vunpack.c.l.b16 %v1051
    %v1067 = vunpack.c.l.b16 %v1052
    %v1068 = vpack.c.b16 %v1065, %v1064
    %v1069 = vpack.c.b16 %v1067, %v1066
    %v1073 = vsel %vm56, %v1048, 0
    %1075 = vmatprep.subr.bf16.mxu0 0
    %1076 = vmatpush1.bf16.msra.mxu0 0
    %1077 = vmatprep.subr.bf16.mxu0 0
    %1078 = vmatpush1.bf16.msra.mxu0 0
    %1079 = vmatprep.subr.bf16.mxu0 0
    %1080 = vmatpush1.bf16.msra.mxu0 0
    %1081 = vmatprep.subr.bf16.mxu0 0
    %1082 = vmatpush1.bf16.msra.mxu0 0
    %1083 = vmatprep.subr.bf16.mxu0 0
    %1084 = vmatpush1.bf16.msra.mxu0 0
    %1085 = vmatprep.subr.bf16.mxu0 0
    %1086 = vmatpush1.bf16.msra.mxu0 0
    %1087 = vmatprep.subr.bf16.mxu0 0
    %1088 = vmatpush1.bf16.msra.mxu0 %v1069
    %1089 = vmatprep.subr.bf16.mxu0 0
    %1090 = vmatpush1.bf16.msra.mxu0 %v1068
    %1091 = vmatprep.subr.bf16.mxu0 0
    %1092 = vmatpush2.bf16.msra.mxu0 0
    %1093 = vmatprep.subr.bf16.mxu0 0
    %1094 = vmatpush2.bf16.msra.mxu0 0
    %1095 = vmatprep.subr.bf16.mxu0 0
    %1096 = vmatpush2.bf16.msra.mxu0 0
    %1097 = vmatprep.subr.bf16.mxu0 0
    %1098 = vmatpush2.bf16.msra.mxu0 0
    %1099 = vmatprep.subr.bf16.mxu0 0
    %1100 = vmatpush2.bf16.msra.mxu0 0
    %1101 = vmatprep.subr.bf16.mxu0 0
    %1102 = vmatpush2.bf16.msra.mxu0 0
    %1103 = vmatprep.subr.bf16.mxu0 0
    %1104 = vmatpush2.bf16.msra.mxu0 0
    %1105 = vmatprep.subr.bf16.mxu0 0
    %1106 = vmatpush2.bf16.msra.mxu0 0
    %1107 = vmatprep.mubr.bf16.mxu0 0
    %1108 = vmatmul.mubr.bf16.gmra.mxu0 %v1073
    %v1109 = vpop.f32.mrf.mxu0
    %v1110 = vadd.f32 %v1058, %v1109
    %v1111 = vpop.f32.mrf.mxu0
    %v1112 = vpop.f32.mrf.mxu0
    %v1113 = vpop.f32.mrf.mxu0
    %1114 = vdwg.mxu0
    %v1115 = vmax.f32 %v1110, 0.0
    %v1116 = vpack.c.bf16 %v1115, %v1115
    %v1117 = vld [vmem:[%s9] sm:$0xf]
    %v1118 = vld [vmem:[%s9 + $0x4] sm:$0xf]
    %v1119 = vld [vmem:[%s9 + $0x8] sm:$0xf]
    %v1120 = vld [vmem:[%s9 + $0xc] sm:$0xf]
    %v1121 = vld [vmem:[%s9 + $0x10] sm:$0xf]
    %v1122 = vld [vmem:[%s9 + $0x14] sm:$0xf]
    %v1123 = vld [vmem:[%s9 + $0x18] sm:$0xf]
    %v1124 = vld [vmem:[%s9 + $0x1c] sm:$0xf]
    %v1125 = vld [vmem:[%s9 + $0x20] sm:$0xf]
    %v1126 = vld [vmem:[%s9 + $0x24] sm:$0xf]
    %v1127 = vld [vmem:[%s9 + $0x28] sm:$0xf]
    %v1128 = vld [vmem:[%s9 + $0x2c] sm:$0xf]
    %v1129 = vld [vmem:[%s9 + $0x30] sm:$0xf]
    %v1130 = vld [vmem:[%s9 + $0x34] sm:$0xf]
    %v1131 = vld [vmem:[%s9 + $0x38] sm:$0xf]
    %v1132 = vld [vmem:[%s9 + $0x3c] sm:$0xf]
    %v1133 = vlaneseq
    %v1134 = vshrl.u32 %v1133, 7
    %v1135 = vsub.s32 5, %v1134
    %v1136 = vrot.slane %v39, %v1135
    %v1153 = vunpack.c.l.b16 %v1117
    %v1154 = vunpack.c.l.b16 %v1118
    %v1155 = vunpack.c.l.b16 %v1119
    %v1156 = vunpack.c.l.b16 %v1120
    %v1157 = vunpack.c.l.b16 %v1121
    %v1158 = vunpack.c.l.b16 %v1122
    %v1159 = vunpack.c.l.b16 %v1123
    %v1160 = vunpack.c.l.b16 %v1124
    %v1161 = vunpack.c.l.b16 %v1125
    %v1162 = vunpack.c.l.b16 %v1126
    %v1163 = vunpack.c.l.b16 %v1127
    %v1164 = vunpack.c.l.b16 %v1128
    %v1165 = vunpack.c.l.b16 %v1129
    %v1166 = vunpack.c.l.b16 %v1130
    %v1167 = vunpack.c.l.b16 %v1131
    %v1168 = vunpack.c.l.b16 %v1132
    %v1169 = vpack.c.b16 %v1154, %v1153
    %v1170 = vpack.c.b16 %v1156, %v1155
    %v1171 = vpack.c.b16 %v1158, %v1157
    %v1172 = vpack.c.b16 %v1160, %v1159
    %v1173 = vpack.c.b16 %v1162, %v1161
    %v1174 = vpack.c.b16 %v1164, %v1163
    %v1175 = vpack.c.b16 %v1166, %v1165
    %v1176 = vpack.c.b16 %v1168, %v1167
    %1185 = vmatprep.subr.bf16.mxu0 0
    %1186 = vmatpush1.bf16.msra.mxu0 %v1176
    %1187 = vmatprep.subr.bf16.mxu0 0
    %1188 = vmatpush1.bf16.msra.mxu0 %v1175
    %1189 = vmatprep.subr.bf16.mxu0 0
    %1190 = vmatpush1.bf16.msra.mxu0 %v1174
    %1191 = vmatprep.subr.bf16.mxu0 0
    %1192 = vmatpush1.bf16.msra.mxu0 %v1173
    %1193 = vmatprep.subr.bf16.mxu0 0
    %1194 = vmatpush1.bf16.msra.mxu0 %v1172
    %1195 = vmatprep.subr.bf16.mxu0 0
    %1196 = vmatpush1.bf16.msra.mxu0 %v1171
    %1197 = vmatprep.subr.bf16.mxu0 0
    %1198 = vmatpush1.bf16.msra.mxu0 %v1170
    %1199 = vmatprep.subr.bf16.mxu0 0
    %1200 = vmatpush1.bf16.msra.mxu0 %v1169
    %1201 = vmatprep.subr.bf16.mxu0 0
    %1202 = vmatpush2.bf16.msra.mxu0 0
    %1203 = vmatprep.subr.bf16.mxu0 0
    %1204 = vmatpush2.bf16.msra.mxu0 0
    %1205 = vmatprep.subr.bf16.mxu0 0
    %1206 = vmatpush2.bf16.msra.mxu0 0
    %1207 = vmatprep.subr.bf16.mxu0 0
    %1208 = vmatpush2.bf16.msra.mxu0 0
    %1209 = vmatprep.subr.bf16.mxu0 0
    %1210 = vmatpush2.bf16.msra.mxu0 0
    %1211 = vmatprep.subr.bf16.mxu0 0
    %1212 = vmatpush2.bf16.msra.mxu0 0
    %1213 = vmatprep.subr.bf16.mxu0 0
    %1214 = vmatpush2.bf16.msra.mxu0 0
    %1215 = vmatprep.subr.bf16.mxu0 0
    %1216 = vmatpush2.bf16.msra.mxu0 0
    %1217 = vmatprep.mubr.bf16.mxu0 0
    %1218 = vmatmul.mubr.bf16.gmra.mxu0 %v1116
    %v1219 = vpop.f32.mrf.mxu0
    %v1220 = vadd.f32 %v1136, %v1219
    %v1221 = vpop.f32.mrf.mxu0
    %v1222 = vpop.f32.mrf.mxu0
    %v1223 = vpop.f32.mrf.mxu0
    %1224 = vdwg.mxu0
    %1225 = vst.msk [vmem:[#allocation2] sm:$0xff] %vm56, %v1220
    // Predicated region
    $region42: #{tpu_custom_call.1} parent=1 // pred_check
      _
    $region43: #{tpu_custom_call.1} parent=1 // pred_check_branch
      %1227 = sbr.rel (0) target = $region45
    $region44: #{tpu_custom_call.1} parent=1 // pred_region
      %s1229 = ssub.s32 128, 128
      %1230 = vsyncadd [#allocation3], %s1229
      %s1232 = sshll.u32 [#allocation2], 4
      %s1233 = int_to_ptr.vmem [resolvable:$true] %s1232
      %1235 = dma.vmem_to_hbm [thread:$0]  %s1233, 128, %s10, [#allocation3]
    $region45: #{tpu_custom_call.1} parent=1 // pred_fallthru
      _
    // Predicated region
    $region46: #{tpu_custom_call.1} parent=1 // pred_check
      _
    $region47: #{tpu_custom_call.1} parent=1 // pred_check_branch
      %1237 = sbr.rel (0) target = $region49
    $region48: #{tpu_custom_call.1} parent=1 // pred_region
      _
    $region49: #{tpu_custom_call.1} parent=1 // pred_fallthru
      _
    // Predicated region
    $region50: #{tpu_custom_call.1} parent=1 // pred_check
      _
    $region51: #{tpu_custom_call.1} parent=1 // pred_check_branch
      %1239 = sbr.rel (0) target = $region53
    $region52: #{tpu_custom_call.1} parent=1 // pred_region
      %1240 = dma.done [#allocation3], 128
    $region53: #{tpu_custom_call.1} parent=1 // pred_fallthru
      _
    // Predicated region
    $region54: #{tpu_custom_call.1} parent=1 // pred_check
      _
    $region55: #{tpu_custom_call.1} parent=1 // pred_check_branch
      %1242 = sbr.rel (0) target = $region57
    $region56: #{tpu_custom_call.1} parent=1 // pred_region
      _
    $region57: #{tpu_custom_call.1} parent=1 // pred_fallthru
      _
    %1243 = vsyncpa [#allocation3], 1

</llo_original>
